<compile_context>
chip_gen: v5e
topology: v5e:2x2
jax: 0.10.0
libtpu: 0.0.40
codegen_flags: <defaults>
</compile_context>

<pallas_src>
import functools
import math

import jax
import jax.numpy as jnp
from jax import lax
from jax.experimental import pallas as pl
from jax.experimental.pallas import tpu as pltpu


def _dwconv_kernel(x_ref, w_ref, b_ref, o_ref, halo_ref, *, sub_h):
    # x_ref:    (H, W, C)           un-padded image of the current batch (resident)
    # w_ref:    (9, C)              depthwise taps, tap k = kh*3 + kw
    # b_ref:    (1, C)              conv bias
    # o_ref:    (tile_h, W, C)      output row tile
    # halo_ref: (tile_h+2, W+2, C)  VMEM scratch: zero-padded halo window
    H, W, C = x_ref.shape
    tile_h = o_ref.shape[0]
    i = pl.program_id(1)
    n_tiles = pl.num_programs(1)
    row0 = pl.multiple_of(i * tile_h, tile_h)
    n_sub = tile_h // sub_h

    # ---- build the zero-padded halo window in VMEM (replaces host jnp.pad) ----
    # zero the 1-element ring (corners included), interior is overwritten below
    halo_ref[pl.ds(0, 1), :, :] = jnp.zeros((1, W + 2, C), halo_ref.dtype)
    halo_ref[pl.ds(tile_h + 1, 1), :, :] = jnp.zeros((1, W + 2, C), halo_ref.dtype)
    halo_ref[:, pl.ds(0, 1), :] = jnp.zeros((tile_h + 2, 1, C), halo_ref.dtype)
    halo_ref[:, pl.ds(W + 1, 1), :] = jnp.zeros((tile_h + 2, 1, C), halo_ref.dtype)

    def copy_body(s, carry):
        r0 = s * sub_h
        halo_ref[pl.ds(1 + r0, sub_h), pl.ds(1, W), :] = x_ref[pl.ds(row0 + r0, sub_h), :, :]
        return carry

    lax.fori_loop(0, n_sub, copy_body, 0, unroll=True)

    @pl.when(i > 0)
    def _():
        # row above this tile exists -> fill the top halo row
        halo_ref[pl.ds(0, 1), pl.ds(1, W), :] = x_ref[pl.ds(row0 - 1, 1), :, :]

    @pl.when(i < n_tiles - 1)
    def _():
        # row below this tile exists -> fill the bottom halo row
        halo_ref[pl.ds(tile_h + 1, 1), pl.ds(1, W), :] = x_ref[pl.ds(row0 + tile_h, 1), :, :]

    # ---- hoisted taps / bias (loaded once per grid step) ----
    w = w_ref[...].astype(jnp.float32)                       # (9, C)
    taps = [w[k].reshape(1, 1, C) for k in range(9)]
    bias = b_ref[...].astype(jnp.float32).reshape(1, 1, C)

    # ---- 3x3 depthwise MACs over sub_h-row chunks (bounded vreg live range) ----
    def sub_body(s, carry):
        r0 = s * sub_h
        acc = jnp.zeros((sub_h, W, C), jnp.float32)
        for kh in range(3):
            for kw in range(3):
                # shift folded into the vld address of the halo-scratch load
                win = halo_ref[pl.ds(r0 + kh, sub_h), pl.ds(kw, W), :].astype(jnp.float32)
                acc = acc + win * taps[kh * 3 + kw]
        o_ref[pl.ds(r0, sub_h), :, :] = (acc + bias).astype(o_ref.dtype)
        return carry

    lax.fori_loop(0, n_sub, sub_body, 0, unroll=True)


def _pick_tile_h(H, W, C, itemsize, budget_bytes):
    """Largest divisor of H whose output block fits the VMEM byte budget."""
    rows = max(1, int(budget_bytes) // max(1, W * C * itemsize))
    tile = 1
    for d in range(1, H + 1):
        if H % d == 0 and d <= rows:
            tile = d
    return tile


def _pick_sub_h(tile_h):
    """Row sub-chunk (<= 8) that divides tile_h."""
    if tile_h <= 8:
        return tile_h
    for d in range(8, 0, -1):
        if tile_h % d == 0:
            return d
    return 1


def dwconv(x, conv_w, conv_b, H, W, *, tile_budget_bytes=2 << 20):
    """Depthwise 3x3 conv, stride 1, padding 1, groups=C (PyTorch DWConv).

    x:      (B, N, C) with N == H * W
    conv_w: (C, 1, 3, 3)   PyTorch depthwise Conv2d weight layout
    conv_b: (C,)
    returns (B, N, C)
    """
    B, N, C = x.shape
    assert N == H * W, (N, H, W)
    isz = x.dtype.itemsize

    # Free layout changes only: (B,N,C) -> (B,H,W,C) is a metadata reshape,
    # taps -> (9, C) / bias -> (1, C) are tiny. No channel padding, no spatial pad.
    x_img = x.reshape(B, H, W, C)
    w_taps = conv_w.reshape(C, 9).T            # (9, C), tap k = kh*3 + kw
    b_row = conv_b.reshape(1, C)

    tile_h = _pick_tile_h(H, W, C, isz, tile_budget_bytes)
    sub_h = _pick_sub_h(tile_h)
    grid = (B, H // tile_h)

    # VMEM budget estimate (account for (8,128) layout padding), capped so the
    # limit is attainable on v7x (64 MiB/TC).
    cp = -(-C // 128) * 128
    pad8 = lambda n: -(-n // 8) * 8
    in_buf = H * pad8(W) * cp * isz
    out_buf = tile_h * pad8(W) * cp * isz
    halo_buf = (tile_h + 2) * pad8(W + 2) * cp * isz
    small = 2 * (pad8(9) + pad8(1)) * cp * 4
    vmem_est = 2 * in_buf + 2 * out_buf + halo_buf + small
    vmem_limit = int(min(max(2 * vmem_est, 4 << 20), 56 << 20))

    wsz = conv_w.dtype.itemsize
    cost = pl.CostEstimate(
        flops=2 * 9 * B * H * W * C,
        transcendentals=0,
        bytes_accessed=isz * 2 * B * H * W * C + wsz * (9 * C + C),
    )

    out = pl.pallas_call(
        functools.partial(_dwconv_kernel, sub_h=sub_h),
        out_shape=jax.ShapeDtypeStruct((B, H, W, C), x.dtype),
        grid=grid,
        in_specs=[
            # whole (un-padded) image of batch b; constant block index along the
            # row-tile axis keeps it resident across that axis.
            pl.BlockSpec((None, H, W, C), lambda b, i: (b, 0, 0, 0)),
            pl.BlockSpec((9, C), lambda b, i: (0, 0)),
            pl.BlockSpec((1, C), lambda b, i: (0, 0)),
        ],
        out_specs=pl.BlockSpec((None, tile_h, W, C), lambda b, i: (b, i, 0, 0)),
        scratch_shapes=[pltpu.VMEM((tile_h + 2, W + 2, C), x.dtype)],
        compiler_params=pltpu.CompilerParams(
            dimension_semantics=("parallel", "parallel"),
            vmem_limit_bytes=vmem_limit,
        ),
        cost_estimate=cost,
    )(x_img, w_taps, b_row)

    return out.reshape(B, N, C)


def _ref_dwconv(x, conv_w, conv_b, H, W):
    """Pure-JAX reference (same shift-and-add formulation, fp32)."""
    B, N, C = x.shape
    x_img = x.reshape(B, H, W, C)
    x_padded = jnp.pad(x_img, ((0, 0), (1, 1), (1, 1), (0, 0)))
    taps = conv_w.reshape(C, 9).T                           # (9, C)
    ref = jnp.zeros((B, H, W, C), jnp.float32)
    for kh in range(3):
        for kw in range(3):
            ref = ref + (x_padded[:, kh:kh + H, kw:kw + W, :]
                         * taps[kh * 3 + kw][None, None, None, :])
    return (ref + conv_b[None, None, None, :]).reshape(B, N, C)


if __name__ == "__main__":
    key = jax.random.PRNGKey(0)

    # Test 1: shapes consistent with the module: batch=2, dim=32, H=W=16 (N=256).
    B, C = 2, 32
    H = W = 16
    N = H * W
    kx, kwt, kb = jax.random.split(key, 3)
    x = jax.random.normal(kx, (B, N, C), dtype=jnp.float32)
    # PVT _init_weights: depthwise conv weight ~ N(0, sqrt(2/fan_out)), fan_out = 9.
    conv_w = jax.random.normal(kwt, (C, 1, 3, 3), dtype=jnp.float32) * math.sqrt(2.0 / 9.0)
    conv_b = 0.1 * jax.random.normal(kb, (C,), dtype=jnp.float32)

    out = dwconv(x, conv_w, conv_b, H, W)
    out = jax.block_until_ready(out)
    assert out.shape == (B, N, C), out.shape
    ref = _ref_dwconv(x, conv_w, conv_b, H, W)
    assert jnp.allclose(out, ref, atol=1e-5, rtol=1e-5), float(jnp.max(jnp.abs(out - ref)))

    # Test 2: force multiple row tiles (exercises the top/bottom halo pl.when path)
    # and a non-square image.
    B2, C2, H2, W2 = 1, 32, 12, 8
    N2 = H2 * W2
    kx2, kw2, kb2 = jax.random.split(jax.random.PRNGKey(1), 3)
    x2 = jax.random.normal(kx2, (B2, N2, C2), dtype=jnp.float32)
    conv_w2 = jax.random.normal(kw2, (C2, 1, 3, 3), dtype=jnp.float32) * math.sqrt(2.0 / 9.0)
    conv_b2 = 0.1 * jax.random.normal(kb2, (C2,), dtype=jnp.float32)

    out2 = dwconv(x2, conv_w2, conv_b2, H2, W2, tile_budget_bytes=4 * 1024)  # tile_h=4, grid (1,3)
    out2 = jax.block_until_ready(out2)
    ref2 = _ref_dwconv(x2, conv_w2, conv_b2, H2, W2)
    assert jnp.allclose(out2, ref2, atol=1e-5, rtol=1e-5), float(jnp.max(jnp.abs(out2 - ref2)))

    print("KERNEL_OK")
</pallas_src>

<mosaic_0001>
module attributes {stable_mosaic.version = 11 : i64} {
  func.func @_dwconv_kernel(%arg0: i32, %arg1: i32, %arg2: memref<1x16x16x32xf32, #tpu.memory_space<vmem>>, %arg3: memref<9x32xf32, #tpu.memory_space<vmem>>, %arg4: memref<1x32xf32, #tpu.memory_space<vmem>>, %arg5: memref<1x16x16x32xf32, #tpu.memory_space<vmem>>, %arg6: memref<18x18x32xf32, #tpu.memory_space<vmem>>) attributes {dimension_semantics = [#tpu.dimension_semantics<parallel>, #tpu.dimension_semantics<parallel>], iteration_bounds = array<i64: 2, 1>, scalar_prefetch = 0 : i64, scratch_operands = 1 : i64, tpu.core_type = #tpu.core_type<tc>, window_params = [{transform_indices = @transform_0, window_bounds = array<i64: 1, 16, 16, 32>}, {pipeline_mode = #tpu.pipeline_mode<synchronous>, transform_indices = @transform_1, window_bounds = array<i64: 9, 32>}, {pipeline_mode = #tpu.pipeline_mode<synchronous>, transform_indices = @transform_2, window_bounds = array<i64: 1, 32>}, {transform_indices = @transform_3, window_bounds = array<i64: 1, 16, 16, 32>}]} {
    %c16_i32 = arith.constant 16 : i32
    %0 = arith.muli %arg1, %c16_i32 : i32
    %1 = tpu.assume_multiple %0, 16 : i32
    %cst = arith.constant 0.000000e+00 : f32
    %2 = vector.broadcast %cst : f32 to vector<1x18x32xf32>
    %c0 = arith.constant 0 : index
    %c0_0 = arith.constant 0 : index
    %c0_1 = arith.constant 0 : index
    %3 = vector.load %arg6[%c0, %c0_0, %c0_1] : memref<18x18x32xf32, #tpu.memory_space<vmem>>, vector<1x18x32xf32>
    tpu.vector_store %arg6[%c0, %c0_0, %c0_1], %2 {strides = array<i32>} : memref<18x18x32xf32, #tpu.memory_space<vmem>>, vector<1x18x32xf32>,
    %cst_2 = arith.constant 0.000000e+00 : f32
    %4 = vector.broadcast %cst_2 : f32 to vector<1x18x32xf32>
    %c17 = arith.constant 17 : index
    %c0_3 = arith.constant 0 : index
    %c0_4 = arith.constant 0 : index
    %5 = vector.load %arg6[%c17, %c0_3, %c0_4] : memref<18x18x32xf32, #tpu.memory_space<vmem>>, vector<1x18x32xf32>
    tpu.vector_store %arg6[%c17, %c0_3, %c0_4], %4 {strides = array<i32>} : memref<18x18x32xf32, #tpu.memory_space<vmem>>, vector<1x18x32xf32>,
    %cst_5 = arith.constant 0.000000e+00 : f32
    %6 = vector.broadcast %cst_5 : f32 to vector<18x1x32xf32>
    %c0_6 = arith.constant 0 : index
    %c0_7 = arith.constant 0 : index
    %c0_8 = arith.constant 0 : index
    %7 = vector.load %arg6[%c0_6, %c0_7, %c0_8] : memref<18x18x32xf32, #tpu.memory_space<vmem>>, vector<18x1x32xf32>
    tpu.vector_store %arg6[%c0_6, %c0_7, %c0_8], %6 {strides = array<i32>} : memref<18x18x32xf32, #tpu.memory_space<vmem>>, vector<18x1x32xf32>,
    %cst_9 = arith.constant 0.000000e+00 : f32
    %8 = vector.broadcast %cst_9 : f32 to vector<18x1x32xf32>
    %c0_10 = arith.constant 0 : index
    %c17_11 = arith.constant 17 : index
    %c0_12 = arith.constant 0 : index
    %9 = vector.load %arg6[%c0_10, %c17_11, %c0_12] : memref<18x18x32xf32, #tpu.memory_space<vmem>>, vector<18x1x32xf32>
    tpu.vector_store %arg6[%c0_10, %c17_11, %c0_12], %8 {strides = array<i32>} : memref<18x18x32xf32, #tpu.memory_space<vmem>>, vector<18x1x32xf32>,
    %c0_i32 = arith.constant 0 : i32
    %c8_i32 = arith.constant 8 : i32
    %10 = arith.muli %c0_i32, %c8_i32 : i32
    %11 = arith.addi %1, %10 : i32
    %c0_13 = arith.constant 0 : index
    %12 = arith.index_cast %11 : i32 to index
    %c0_14 = arith.constant 0 : index
    %c0_15 = arith.constant 0 : index
    %13 = vector.load %arg2[%c0_13, %12, %c0_14, %c0_15] : memref<1x16x16x32xf32, #tpu.memory_space<vmem>>, vector<1x8x16x32xf32>
    %14 = vector.shape_cast %13 : vector<1x8x16x32xf32> to vector<8x16x32xf32>
    %c1_i32 = arith.constant 1 : i32
    %15 = arith.addi %c1_i32, %10 : i32
    %16 = arith.index_cast %15 : i32 to index
    %c1 = arith.constant 1 : index
    %c0_16 = arith.constant 0 : index
    %17 = vector.load %arg6[%16, %c1, %c0_16] : memref<18x18x32xf32, #tpu.memory_space<vmem>>, vector<8x16x32xf32>
    tpu.vector_store %arg6[%16, %c1, %c0_16], %14 {strides = array<i32>} : memref<18x18x32xf32, #tpu.memory_space<vmem>>, vector<8x16x32xf32>,
    %c1_i32_17 = arith.constant 1 : i32
    %c8_i32_18 = arith.constant 8 : i32
    %18 = arith.muli %c1_i32_17, %c8_i32_18 : i32
    %19 = arith.addi %1, %18 : i32
    %c0_19 = arith.constant 0 : index
    %20 = arith.index_cast %19 : i32 to index
    %c0_20 = arith.constant 0 : index
    %c0_21 = arith.constant 0 : index
    %21 = vector.load %arg2[%c0_19, %20, %c0_20, %c0_21] : memref<1x16x16x32xf32, #tpu.memory_space<vmem>>, vector<1x8x16x32xf32>
    %22 = vector.shape_cast %21 : vector<1x8x16x32xf32> to vector<8x16x32xf32>
    %c1_i32_22 = arith.constant 1 : i32
    %23 = arith.addi %c1_i32_22, %18 : i32
    %24 = arith.index_cast %23 : i32 to index
    %c1_23 = arith.constant 1 : index
    %c0_24 = arith.constant 0 : index
    %25 = vector.load %arg6[%24, %c1_23, %c0_24] : memref<18x18x32xf32, #tpu.memory_space<vmem>>, vector<8x16x32xf32>
    tpu.vector_store %arg6[%24, %c1_23, %c0_24], %22 {strides = array<i32>} : memref<18x18x32xf32, #tpu.memory_space<vmem>>, vector<8x16x32xf32>,
    %c2_i32 = arith.constant 2 : i32
    %c0_i32_25 = arith.constant 0 : i32
    %26 = arith.cmpi sgt, %arg1, %c0_i32_25 : i32
    %27 = arith.extui %26 : i1 to i32
    %c0_i32_26 = arith.constant 0 : i32
    %28 = arith.cmpi ne, %27, %c0_i32_26 : i32
    scf.if %28 {
      %c1_i32_99 = arith.constant 1 : i32
      %186 = arith.subi %1, %c1_i32_99 : i32
      %c0_100 = arith.constant 0 : index
      %187 = arith.index_cast %186 : i32 to index
      %c0_101 = arith.constant 0 : index
      %c0_102 = arith.constant 0 : index
      %188 = vector.load %arg2[%c0_100, %187, %c0_101, %c0_102] : memref<1x16x16x32xf32, #tpu.memory_space<vmem>>, vector<1x1x16x32xf32>
      %189 = vector.shape_cast %188 : vector<1x1x16x32xf32> to vector<1x16x32xf32>
      %c0_103 = arith.constant 0 : index
      %c1_104 = arith.constant 1 : index
      %c0_105 = arith.constant 0 : index
      %190 = vector.load %arg6[%c0_103, %c1_104, %c0_105] : memref<18x18x32xf32, #tpu.memory_space<vmem>>, vector<1x16x32xf32>
      tpu.vector_store %arg6[%c0_103, %c1_104, %c0_105], %189 {strides = array<i32>} : memref<18x18x32xf32, #tpu.memory_space<vmem>>, vector<1x16x32xf32>,
    } else {
    }
    %c0_i32_27 = arith.constant 0 : i32
    %29 = arith.cmpi slt, %arg1, %c0_i32_27 : i32
    %30 = arith.extui %29 : i1 to i32
    %c0_i32_28 = arith.constant 0 : i32
    %31 = arith.cmpi ne, %30, %c0_i32_28 : i32
    scf.if %31 {
      %c16_i32_99 = arith.constant 16 : i32
      %186 = arith.addi %1, %c16_i32_99 : i32
      %c0_100 = arith.constant 0 : index
      %187 = arith.index_cast %186 : i32 to index
      %c0_101 = arith.constant 0 : index
      %c0_102 = arith.constant 0 : index
      %188 = vector.load %arg2[%c0_100, %187, %c0_101, %c0_102] : memref<1x16x16x32xf32, #tpu.memory_space<vmem>>, vector<1x1x16x32xf32>
      %189 = vector.shape_cast %188 : vector<1x1x16x32xf32> to vector<1x16x32xf32>
      %c17_103 = arith.constant 17 : index
      %c1_104 = arith.constant 1 : index
      %c0_105 = arith.constant 0 : index
      %190 = vector.load %arg6[%c17_103, %c1_104, %c0_105] : memref<18x18x32xf32, #tpu.memory_space<vmem>>, vector<1x16x32xf32>
      tpu.vector_store %arg6[%c17_103, %c1_104, %c0_105], %189 {strides = array<i32>} : memref<18x18x32xf32, #tpu.memory_space<vmem>>, vector<1x16x32xf32>,
    } else {
    }
    %c0_29 = arith.constant 0 : index
    %c0_30 = arith.constant 0 : index
    %32 = vector.load %arg3[%c0_29, %c0_30] : memref<9x32xf32, #tpu.memory_space<vmem>>, vector<9x32xf32>
    %33 = vector.extract_strided_slice %32 {offsets = [0, 0], sizes = [1, 32], strides = [1, 1]} : vector<9x32xf32> to vector<1x32xf32>
    %34 = vector.shape_cast %33 : vector<1x32xf32> to vector<32xf32>
    %35 = vector.shape_cast %34 : vector<32xf32> to vector<1x1x32xf32>
    %36 = vector.extract_strided_slice %32 {offsets = [1, 0], sizes = [1, 32], strides = [1, 1]} : vector<9x32xf32> to vector<1x32xf32>
    %37 = vector.shape_cast %36 : vector<1x32xf32> to vector<32xf32>
    %38 = vector.shape_cast %37 : vector<32xf32> to vector<1x1x32xf32>
    %39 = vector.extract_strided_slice %32 {offsets = [2, 0], sizes = [1, 32], strides = [1, 1]} : vector<9x32xf32> to vector<1x32xf32>
    %40 = vector.shape_cast %39 : vector<1x32xf32> to vector<32xf32>
    %41 = vector.shape_cast %40 : vector<32xf32> to vector<1x1x32xf32>
    %42 = vector.extract_strided_slice %32 {offsets = [3, 0], sizes = [1, 32], strides = [1, 1]} : vector<9x32xf32> to vector<1x32xf32>
    %43 = vector.shape_cast %42 : vector<1x32xf32> to vector<32xf32>
    %44 = vector.shape_cast %43 : vector<32xf32> to vector<1x1x32xf32>
    %45 = vector.extract_strided_slice %32 {offsets = [4, 0], sizes = [1, 32], strides = [1, 1]} : vector<9x32xf32> to vector<1x32xf32>
    %46 = vector.shape_cast %45 : vector<1x32xf32> to vector<32xf32>
    %47 = vector.shape_cast %46 : vector<32xf32> to vector<1x1x32xf32>
    %48 = vector.extract_strided_slice %32 {offsets = [5, 0], sizes = [1, 32], strides = [1, 1]} : vector<9x32xf32> to vector<1x32xf32>
    %49 = vector.shape_cast %48 : vector<1x32xf32> to vector<32xf32>
    %50 = vector.shape_cast %49 : vector<32xf32> to vector<1x1x32xf32>
    %51 = vector.extract_strided_slice %32 {offsets = [6, 0], sizes = [1, 32], strides = [1, 1]} : vector<9x32xf32> to vector<1x32xf32>
    %52 = vector.shape_cast %51 : vector<1x32xf32> to vector<32xf32>
    %53 = vector.shape_cast %52 : vector<32xf32> to vector<1x1x32xf32>
    %54 = vector.extract_strided_slice %32 {offsets = [7, 0], sizes = [1, 32], strides = [1, 1]} : vector<9x32xf32> to vector<1x32xf32>
    %55 = vector.shape_cast %54 : vector<1x32xf32> to vector<32xf32>
    %56 = vector.shape_cast %55 : vector<32xf32> to vector<1x1x32xf32>
    %57 = vector.extract_strided_slice %32 {offsets = [8, 0], sizes = [1, 32], strides = [1, 1]} : vector<9x32xf32> to vector<1x32xf32>
    %58 = vector.shape_cast %57 : vector<1x32xf32> to vector<32xf32>
    %59 = vector.shape_cast %58 : vector<32xf32> to vector<1x1x32xf32>
    %c0_31 = arith.constant 0 : index
    %c0_32 = arith.constant 0 : index
    %60 = vector.load %arg4[%c0_31, %c0_32] : memref<1x32xf32, #tpu.memory_space<vmem>>, vector<1x32xf32>
    %61 = vector.shape_cast %60 : vector<1x32xf32> to vector<1x1x32xf32>
    %c0_i32_33 = arith.constant 0 : i32
    %c8_i32_34 = arith.constant 8 : i32
    %62 = arith.muli %c0_i32_33, %c8_i32_34 : i32
    %cst_35 = arith.constant 0.000000e+00 : f32
    %63 = vector.broadcast %cst_35 : f32 to vector<8x16x32xf32>
    %c0_i32_36 = arith.constant 0 : i32
    %64 = arith.addi %62, %c0_i32_36 : i32
    %65 = arith.index_cast %64 : i32 to index
    %c0_37 = arith.constant 0 : index
    %c0_38 = arith.constant 0 : index
    %66 = vector.load %arg6[%65, %c0_37, %c0_38] : memref<18x18x32xf32, #tpu.memory_space<vmem>>, vector<8x16x32xf32>
    %67 = vector.broadcast %35 : vector<1x1x32xf32> to vector<8x16x32xf32>
    %68 = arith.mulf %66, %67 : vector<8x16x32xf32>
    %69 = arith.addf %63, %68 : vector<8x16x32xf32>
    %c0_i32_39 = arith.constant 0 : i32
    %70 = arith.addi %62, %c0_i32_39 : i32
    %71 = arith.index_cast %70 : i32 to index
    %c1_40 = arith.constant 1 : index
    %c0_41 = arith.constant 0 : index
    %72 = vector.load %arg6[%71, %c1_40, %c0_41] : memref<18x18x32xf32, #tpu.memory_space<vmem>>, vector<8x16x32xf32>
    %73 = vector.broadcast %38 : vector<1x1x32xf32> to vector<8x16x32xf32>
    %74 = arith.mulf %72, %73 : vector<8x16x32xf32>
    %75 = arith.addf %69, %74 : vector<8x16x32xf32>
    %c0_i32_42 = arith.constant 0 : i32
    %76 = arith.addi %62, %c0_i32_42 : i32
    %77 = arith.index_cast %76 : i32 to index
    %c2 = arith.constant 2 : index
    %c0_43 = arith.constant 0 : index
    %78 = vector.load %arg6[%77, %c2, %c0_43] : memref<18x18x32xf32, #tpu.memory_space<vmem>>, vector<8x16x32xf32>
    %79 = vector.broadcast %41 : vector<1x1x32xf32> to vector<8x16x32xf32>
    %80 = arith.mulf %78, %79 : vector<8x16x32xf32>
    %81 = arith.addf %75, %80 : vector<8x16x32xf32>
    %c1_i32_44 = arith.constant 1 : i32
    %82 = arith.addi %62, %c1_i32_44 : i32
    %83 = arith.index_cast %82 : i32 to index
    %c0_45 = arith.constant 0 : index
    %c0_46 = arith.constant 0 : index
    %84 = vector.load %arg6[%83, %c0_45, %c0_46] : memref<18x18x32xf32, #tpu.memory_space<vmem>>, vector<8x16x32xf32>
    %85 = vector.broadcast %44 : vector<1x1x32xf32> to vector<8x16x32xf32>
    %86 = arith.mulf %84, %85 : vector<8x16x32xf32>
    %87 = arith.addf %81, %86 : vector<8x16x32xf32>
    %c1_i32_47 = arith.constant 1 : i32
    %88 = arith.addi %62, %c1_i32_47 : i32
    %89 = arith.index_cast %88 : i32 to index
    %c1_48 = arith.constant 1 : index
    %c0_49 = arith.constant 0 : index
    %90 = vector.load %arg6[%89, %c1_48, %c0_49] : memref<18x18x32xf32, #tpu.memory_space<vmem>>, vector<8x16x32xf32>
    %91 = vector.broadcast %47 : vector<1x1x32xf32> to vector<8x16x32xf32>
    %92 = arith.mulf %90, %91 : vector<8x16x32xf32>
    %93 = arith.addf %87, %92 : vector<8x16x32xf32>
    %c1_i32_50 = arith.constant 1 : i32
    %94 = arith.addi %62, %c1_i32_50 : i32
    %95 = arith.index_cast %94 : i32 to index
    %c2_51 = arith.constant 2 : index
    %c0_52 = arith.constant 0 : index
    %96 = vector.load %arg6[%95, %c2_51, %c0_52] : memref<18x18x32xf32, #tpu.memory_space<vmem>>, vector<8x16x32xf32>
    %97 = vector.broadcast %50 : vector<1x1x32xf32> to vector<8x16x32xf32>
    %98 = arith.mulf %96, %97 : vector<8x16x32xf32>
    %99 = arith.addf %93, %98 : vector<8x16x32xf32>
    %c2_i32_53 = arith.constant 2 : i32
    %100 = arith.addi %62, %c2_i32_53 : i32
    %101 = arith.index_cast %100 : i32 to index
    %c0_54 = arith.constant 0 : index
    %c0_55 = arith.constant 0 : index
    %102 = vector.load %arg6[%101, %c0_54, %c0_55] : memref<18x18x32xf32, #tpu.memory_space<vmem>>, vector<8x16x32xf32>
    %103 = vector.broadcast %53 : vector<1x1x32xf32> to vector<8x16x32xf32>
    %104 = arith.mulf %102, %103 : vector<8x16x32xf32>
    %105 = arith.addf %99, %104 : vector<8x16x32xf32>
    %c2_i32_56 = arith.constant 2 : i32
    %106 = arith.addi %62, %c2_i32_56 : i32
    %107 = arith.index_cast %106 : i32 to index
    %c1_57 = arith.constant 1 : index
    %c0_58 = arith.constant 0 : index
    %108 = vector.load %arg6[%107, %c1_57, %c0_58] : memref<18x18x32xf32, #tpu.memory_space<vmem>>, vector<8x16x32xf32>
    %109 = vector.broadcast %56 : vector<1x1x32xf32> to vector<8x16x32xf32>
    %110 = arith.mulf %108, %109 : vector<8x16x32xf32>
    %111 = arith.addf %105, %110 : vector<8x16x32xf32>
    %c2_i32_59 = arith.constant 2 : i32
    %112 = arith.addi %62, %c2_i32_59 : i32
    %113 = arith.index_cast %112 : i32 to index
    %c2_60 = arith.constant 2 : index
    %c0_61 = arith.constant 0 : index
    %114 = vector.load %arg6[%113, %c2_60, %c0_61] : memref<18x18x32xf32, #tpu.memory_space<vmem>>, vector<8x16x32xf32>
    %115 = vector.broadcast %59 : vector<1x1x32xf32> to vector<8x16x32xf32>
    %116 = arith.mulf %114, %115 : vector<8x16x32xf32>
    %117 = arith.addf %111, %116 : vector<8x16x32xf32>
    %118 = vector.broadcast %61 : vector<1x1x32xf32> to vector<8x16x32xf32>
    %119 = arith.addf %117, %118 : vector<8x16x32xf32>
    %c0_62 = arith.constant 0 : index
    %120 = arith.index_cast %62 : i32 to index
    %c0_63 = arith.constant 0 : index
    %c0_64 = arith.constant 0 : index
    %121 = vector.load %arg5[%c0_62, %120, %c0_63, %c0_64] : memref<1x16x16x32xf32, #tpu.memory_space<vmem>>, vector<1x8x16x32xf32>
    %122 = vector.shape_cast %121 : vector<1x8x16x32xf32> to vector<8x16x32xf32>
    %123 = vector.shape_cast %119 : vector<8x16x32xf32> to vector<1x8x16x32xf32>
    tpu.vector_store %arg5[%c0_62, %120, %c0_63, %c0_64], %123 {strides = array<i32>} : memref<1x16x16x32xf32, #tpu.memory_space<vmem>>, vector<1x8x16x32xf32>,
    %c1_i32_65 = arith.constant 1 : i32
    %c8_i32_66 = arith.constant 8 : i32
    %124 = arith.muli %c1_i32_65, %c8_i32_66 : i32
    %cst_67 = arith.constant 0.000000e+00 : f32
    %125 = vector.broadcast %cst_67 : f32 to vector<8x16x32xf32>
    %c0_i32_68 = arith.constant 0 : i32
    %126 = arith.addi %124, %c0_i32_68 : i32
    %127 = arith.index_cast %126 : i32 to index
    %c0_69 = arith.constant 0 : index
    %c0_70 = arith.constant 0 : index
    %128 = vector.load %arg6[%127, %c0_69, %c0_70] : memref<18x18x32xf32, #tpu.memory_space<vmem>>, vector<8x16x32xf32>
    %129 = vector.broadcast %35 : vector<1x1x32xf32> to vector<8x16x32xf32>
    %130 = arith.mulf %128, %129 : vector<8x16x32xf32>
    %131 = arith.addf %125, %130 : vector<8x16x32xf32>
    %c0_i32_71 = arith.constant 0 : i32
    %132 = arith.addi %124, %c0_i32_71 : i32
    %133 = arith.index_cast %132 : i32 to index
    %c1_72 = arith.constant 1 : index
    %c0_73 = arith.constant 0 : index
    %134 = vector.load %arg6[%133, %c1_72, %c0_73] : memref<18x18x32xf32, #tpu.memory_space<vmem>>, vector<8x16x32xf32>
    %135 = vector.broadcast %38 : vector<1x1x32xf32> to vector<8x16x32xf32>
    %136 = arith.mulf %134, %135 : vector<8x16x32xf32>
    %137 = arith.addf %131, %136 : vector<8x16x32xf32>
    %c0_i32_74 = arith.constant 0 : i32
    %138 = arith.addi %124, %c0_i32_74 : i32
    %139 = arith.index_cast %138 : i32 to index
    %c2_75 = arith.constant 2 : index
    %c0_76 = arith.constant 0 : index
    %140 = vector.load %arg6[%139, %c2_75, %c0_76] : memref<18x18x32xf32, #tpu.memory_space<vmem>>, vector<8x16x32xf32>
    %141 = vector.broadcast %41 : vector<1x1x32xf32> to vector<8x16x32xf32>
    %142 = arith.mulf %140, %141 : vector<8x16x32xf32>
    %143 = arith.addf %137, %142 : vector<8x16x32xf32>
    %c1_i32_77 = arith.constant 1 : i32
    %144 = arith.addi %124, %c1_i32_77 : i32
    %145 = arith.index_cast %144 : i32 to index
    %c0_78 = arith.constant 0 : index
    %c0_79 = arith.constant 0 : index
    %146 = vector.load %arg6[%145, %c0_78, %c0_79] : memref<18x18x32xf32, #tpu.memory_space<vmem>>, vector<8x16x32xf32>
    %147 = vector.broadcast %44 : vector<1x1x32xf32> to vector<8x16x32xf32>
    %148 = arith.mulf %146, %147 : vector<8x16x32xf32>
    %149 = arith.addf %143, %148 : vector<8x16x32xf32>
    %c1_i32_80 = arith.constant 1 : i32
    %150 = arith.addi %124, %c1_i32_80 : i32
    %151 = arith.index_cast %150 : i32 to index
    %c1_81 = arith.constant 1 : index
    %c0_82 = arith.constant 0 : index
    %152 = vector.load %arg6[%151, %c1_81, %c0_82] : memref<18x18x32xf32, #tpu.memory_space<vmem>>, vector<8x16x32xf32>
    %153 = vector.broadcast %47 : vector<1x1x32xf32> to vector<8x16x32xf32>
    %154 = arith.mulf %152, %153 : vector<8x16x32xf32>
    %155 = arith.addf %149, %154 : vector<8x16x32xf32>
    %c1_i32_83 = arith.constant 1 : i32
    %156 = arith.addi %124, %c1_i32_83 : i32
    %157 = arith.index_cast %156 : i32 to index
    %c2_84 = arith.constant 2 : index
    %c0_85 = arith.constant 0 : index
    %158 = vector.load %arg6[%157, %c2_84, %c0_85] : memref<18x18x32xf32, #tpu.memory_space<vmem>>, vector<8x16x32xf32>
    %159 = vector.broadcast %50 : vector<1x1x32xf32> to vector<8x16x32xf32>
    %160 = arith.mulf %158, %159 : vector<8x16x32xf32>
    %161 = arith.addf %155, %160 : vector<8x16x32xf32>
    %c2_i32_86 = arith.constant 2 : i32
    %162 = arith.addi %124, %c2_i32_86 : i32
    %163 = arith.index_cast %162 : i32 to index
    %c0_87 = arith.constant 0 : index
    %c0_88 = arith.constant 0 : index
    %164 = vector.load %arg6[%163, %c0_87, %c0_88] : memref<18x18x32xf32, #tpu.memory_space<vmem>>, vector<8x16x32xf32>
    %165 = vector.broadcast %53 : vector<1x1x32xf32> to vector<8x16x32xf32>
    %166 = arith.mulf %164, %165 : vector<8x16x32xf32>
    %167 = arith.addf %161, %166 : vector<8x16x32xf32>
    %c2_i32_89 = arith.constant 2 : i32
    %168 = arith.addi %124, %c2_i32_89 : i32
    %169 = arith.index_cast %168 : i32 to index
    %c1_90 = arith.constant 1 : index
    %c0_91 = arith.constant 0 : index
    %170 = vector.load %arg6[%169, %c1_90, %c0_91] : memref<18x18x32xf32, #tpu.memory_space<vmem>>, vector<8x16x32xf32>
    %171 = vector.broadcast %56 : vector<1x1x32xf32> to vector<8x16x32xf32>
    %172 = arith.mulf %170, %171 : vector<8x16x32xf32>
    %173 = arith.addf %167, %172 : vector<8x16x32xf32>
    %c2_i32_92 = arith.constant 2 : i32
    %174 = arith.addi %124, %c2_i32_92 : i32
    %175 = arith.index_cast %174 : i32 to index
    %c2_93 = arith.constant 2 : index
    %c0_94 = arith.constant 0 : index
    %176 = vector.load %arg6[%175, %c2_93, %c0_94] : memref<18x18x32xf32, #tpu.memory_space<vmem>>, vector<8x16x32xf32>
    %177 = vector.broadcast %59 : vector<1x1x32xf32> to vector<8x16x32xf32>
    %178 = arith.mulf %176, %177 : vector<8x16x32xf32>
    %179 = arith.addf %173, %178 : vector<8x16x32xf32>
    %180 = vector.broadcast %61 : vector<1x1x32xf32> to vector<8x16x32xf32>
    %181 = arith.addf %179, %180 : vector<8x16x32xf32>
    %c0_95 = arith.constant 0 : index
    %182 = arith.index_cast %124 : i32 to index
    %c0_96 = arith.constant 0 : index
    %c0_97 = arith.constant 0 : index
    %183 = vector.load %arg5[%c0_95, %182, %c0_96, %c0_97] : memref<1x16x16x32xf32, #tpu.memory_space<vmem>>, vector<1x8x16x32xf32>
    %184 = vector.shape_cast %183 : vector<1x8x16x32xf32> to vector<8x16x32xf32>
    %185 = vector.shape_cast %181 : vector<8x16x32xf32> to vector<1x8x16x32xf32>
    tpu.vector_store %arg5[%c0_95, %182, %c0_96, %c0_97], %185 {strides = array<i32>} : memref<1x16x16x32xf32, #tpu.memory_space<vmem>>, vector<1x8x16x32xf32>,
    %c2_i32_98 = arith.constant 2 : i32
    return
  }
  func.func @transform_0(%arg0: i32, %arg1: i32) -> (i32, i32, i32, i32) {
    %c0_i32 = arith.constant 0 : i32
    %c0_i32_0 = arith.constant 0 : i32
    %c0_i32_1 = arith.constant 0 : i32
    %c0_i32_2 = arith.constant 0 : i32
    return %arg0, %c0_i32, %c0_i32_0, %c0_i32_1 : i32, i32, i32, i32
  }
  func.func @transform_1(%arg0: i32, %arg1: i32) -> (i32, i32) {
    %c0_i32 = arith.constant 0 : i32
    %c0_i32_0 = arith.constant 0 : i32
    %c0_i32_1 = arith.constant 0 : i32
    return %c0_i32, %c0_i32_0 : i32, i32
  }
  func.func @transform_2(%arg0: i32, %arg1: i32) -> (i32, i32) {
    %c0_i32 = arith.constant 0 : i32
    %c0_i32_0 = arith.constant 0 : i32
    %c0_i32_1 = arith.constant 0 : i32
    return %c0_i32, %c0_i32_0 : i32, i32
  }
  func.func @transform_3(%arg0: i32, %arg1: i32) -> (i32, i32, i32, i32) {
    %c0_i32 = arith.constant 0 : i32
    %c0_i32_0 = arith.constant 0 : i32
    %c0_i32_1 = arith.constant 0 : i32
    return %arg0, %arg1, %c0_i32, %c0_i32_0 : i32, i32, i32, i32
  }
}

</mosaic_0001>

<llo_original>
// kernel: tpu_custom_call.1
$region0: #{tpu_custom_call.1}
  #allocation0 [shape = 'u32[]', space=smem, size = 0x4, offset = 0x4, fixed_abs, tag = 'smem constant byte address 0x4 - core index']
  #allocation1 [shape = 'u32[72,128]{1,0:T(1,128)}', space=vmem, size = 0x9000, scoped, tag = 'internal scratch']
  #allocation2 [shape = 'f32[18,18,32]{2,1,0:T(8,128)}', space=vmem, size = 0x36000, scoped, tag = 'scratch operand']
  %s0 = inlined_call_operand.hbm [shape: f32[2,16,16,32], index: 0, kind: input, shape index: {}]
  %s1 = inlined_call_operand.hbm [shape: f32[9,32], index: 1, kind: input, shape index: {}]
  %s2 = inlined_call_operand.vmem [shape: f32[1,32], index: 2, kind: input, shape index: {}]
  %s3 = inlined_call_operand.hbm [shape: f32[2,16,16,32], index: 3, kind: output, shape index: {}]
  %s4 = sld [smem:[#allocation0]]
  $region61: #{tpu_custom_call.1} parent=0
    _
  %s6 = ssub.s32 1, %s4
  %s7 = scalar_select 0, %s6, %s4
  $region1: #{tpu_custom_call.1} parent=0
    #allocation3 [shape = 'u8[262144]{0}', space=vmem, size = 0x40000, scoped, tag = 'input window, operand 0']
    #allocation4 [shape = 's32[2]{0}', space=sflag, size = 0x8, scoped, tag = 'scoped memory for tpu_custom_call.1']
    #allocation5 [shape = 's32[2]{0}', space=sflag, size = 0x8, scoped, tag = 'scoped memory for tpu_custom_call.1']
    #allocation6 [shape = 'u8[8192]{0}', space=vmem, size = 0x2000, scoped, tag = 'input window, operand 1, single buffered']
    #allocation7 [shape = 's32[1]{0}', space=sflag, size = 0x4, scoped, tag = 'scoped memory for tpu_custom_call.1']
    #allocation8 [shape = 'u8[262144]{0}', space=vmem, size = 0x40000, scoped, tag = 'output window, operand 0']
    %8 = vsyncpa [#allocation4], 0
    %s9 = scalar_lea.sflag [#allocation4], 1
    %10 = vsyncpa %s9, 0
    %11 = vsyncpa [#allocation7], 0
    %12 = vsyncpa [#allocation5], 0
    %s13 = scalar_lea.sflag [#allocation5], 1
    %14 = vsyncpa %s13, 0
    loop: start=0, step=1, limit=4
    $region2: #{tpu_custom_call.1} parent=1 // loop_pre_header
      _
    $region3: #{tpu_custom_call.1} parent=1 // loop_header
      %s16 = sphi 0, %s20
      %p17 = scmp.ge.s32.totalorder %s16, 4
      %s23 = sphi 0, %s35
      %s24 = sphi 0, %s31
      %s25 = sphi 0, %s23
      %s26 = sphi 0, %s24
      %s27 = sphi 0, %s25
      %s28 = sphi 0, %s26
      %s38 = sphi 0, %s40
      %s41 = sphi 0, %s38
      %s42 = sphi 0, %s41
      %s58 = sphi 0, %s42
      %s62 = sphi 0, %s62
      %s64 = sphi 0, %s62
      %s65 = sphi 0, %s64
      %s79 = sphi 0, %s65
      %s83 = sphi 0, %s83
      %s85 = sphi 0, %s83
      %s86 = sphi 0, %s85
      %s100 = sphi 0, %s86
      %s108 = sphi 0, %s110
      %s111 = sphi 0, %s108
      %s112 = sphi 0, %s111
      %s128 = sphi 0, %s112
    $region4: #{tpu_custom_call.1} parent=1 // loop_header_branch
      %19 = sbr.rel (%p17) target = $region8
    $region5: #{tpu_custom_call.1} parent=1 // loop_body
      %s21 = ssub.s32 %s16, 1
      %s22 = ssub.s32 %s16, 2
      %s29 = sadd.s32 1, %s24
      %p30 = scmp.ge.s32.totalorder %s29, 1
      %s31 = scalar_select %p30, 0, %s29
      %s32 = sadd.s32 1, %s23
      %s33 = scalar_select %p30, %s32, %s23
      %p34 = scmp.ge.s32.totalorder %s33, 2
      %s35 = scalar_select %p34, 0, %s33
      %s36 = ssub.s32 %s23, %s35
      %p37 = scmp.eq.s32.totalorder %s36, 0
      %s39 = sadd.s32 %s38, 1
      %s40 = scalar_select %p37, %s38, %s39
      %p43 = pneg %p37
      %p44 = scmp.eq.s32.totalorder %s16, 1
      %p45 = por %p43, %p44
      %p46 = scmp.ne.s32.totalorder %s38, %s41
      %p47 = scmp.eq.s32.totalorder %s16, 0
      %p48 = por %p46, %p47
      %p49 = scmp.ne.s32.totalorder %s38, %s41
      %p50 = scmp.eq.s32.totalorder %s21, 1
      %p51 = por %p49, %p50
      %p52 = scmp.ne.s32.totalorder %s41, %s42
      %p53 = scmp.eq.s32.totalorder %s21, 0
      %p54 = por %p52, %p53
      %p55 = scmp.ne.s32.totalorder %s41, %s42
      %p56 = scmp.eq.s32.totalorder %s22, 1
      %p57 = por %p55, %p56
      %p59 = scmp.ne.s32.totalorder %s42, %s58
      %p60 = scmp.eq.s32.totalorder %s22, 0
      %p61 = por %p59, %p60
      %s63 = sadd.s32 %s62, 1
      %p66 = scmp.eq.s32.totalorder %s16, 1
      %p67 = scmp.ne.s32.totalorder %s62, %s64
      %p68 = scmp.eq.s32.totalorder %s16, 0
      %p69 = por %p67, %p68
      %p70 = scmp.ne.s32.totalorder %s62, %s64
      %p71 = scmp.eq.s32.totalorder %s21, 1
      %p72 = por %p70, %p71
      %p73 = scmp.ne.s32.totalorder %s64, %s65
      %p74 = scmp.eq.s32.totalorder %s21, 0
      %p75 = por %p73, %p74
      %p76 = scmp.ne.s32.totalorder %s64, %s65
      %p77 = scmp.eq.s32.totalorder %s22, 1
      %p78 = por %p76, %p77
      %p80 = scmp.ne.s32.totalorder %s65, %s79
      %p81 = scmp.eq.s32.totalorder %s22, 0
      %p82 = por %p80, %p81
      %s84 = sadd.s32 %s83, 1
      %p87 = scmp.eq.s32.totalorder %s16, 1
      %p88 = scmp.ne.s32.totalorder %s83, %s85
      %p89 = scmp.eq.s32.totalorder %s16, 0
      %p90 = por %p88, %p89
      %p91 = scmp.ne.s32.totalorder %s83, %s85
      %p92 = scmp.eq.s32.totalorder %s21, 1
      %p93 = por %p91, %p92
      %p94 = scmp.ne.s32.totalorder %s85, %s86
      %p95 = scmp.eq.s32.totalorder %s21, 0
      %p96 = por %p94, %p95
      %p97 = scmp.ne.s32.totalorder %s85, %s86
      %p98 = scmp.eq.s32.totalorder %s22, 1
      %p99 = por %p97, %p98
      %p101 = scmp.ne.s32.totalorder %s86, %s100
      %p102 = scmp.eq.s32.totalorder %s22, 0
      %p103 = por %p101, %p102
      %s104 = ssub.s32 %s23, %s35
      %s105 = ssub.s32 %s24, %s31
      %s106 = sor.u32 %s104, %s105
      %p107 = scmp.eq.s32.totalorder %s106, 0
      %s109 = sadd.s32 %s108, 1
      %s110 = scalar_select %p107, %s108, %s109
      %p113 = pneg %p107
      %p114 = scmp.eq.s32.totalorder %s16, 1
      %p115 = por %p113, %p114
      %p116 = scmp.ne.s32.totalorder %s108, %s111
      %p117 = scmp.eq.s32.totalorder %s16, 0
      %p118 = por %p116, %p117
      %p119 = scmp.ne.s32.totalorder %s108, %s111
      %p120 = scmp.eq.s32.totalorder %s21, 1
      %p121 = por %p119, %p120
      %p122 = scmp.ne.s32.totalorder %s111, %s112
      %p123 = scmp.eq.s32.totalorder %s21, 0
      %p124 = por %p122, %p123
      %p125 = scmp.ne.s32.totalorder %s111, %s112
      %p126 = scmp.eq.s32.totalorder %s22, 1
      %p127 = por %p125, %p126
      %p129 = scmp.ne.s32.totalorder %s112, %s128
      %p130 = scmp.eq.s32.totalorder %s22, 0
      %p131 = por %p129, %p130
      %p132 = scmp.le.s32.totalorder 1, %s16
      %p133 = scmp.lt.s32.totalorder %s16, 3
      %p134 = pnand %p132, %p133
      %p135 = pneg %p134
      // Predicated region
      $region9: #{tpu_custom_call.1} parent=5 // pred_check
        _
      $region10: #{tpu_custom_call.1} parent=5 // pred_check_branch
        %137 = sbr.rel (%p134) target = $region12
      $region11: #{tpu_custom_call.1} parent=5 // pred_region
        %s138 = ssub.s32 %s16, 1
        // Predicated region
        $region13: #{tpu_custom_call.1} parent=11 // pred_check
          %p139 = pneg %p75
        $region14: #{tpu_custom_call.1} parent=11 // pred_check_branch
          %141 = sbr.rel (%p139) target = $region16
        $region15: #{tpu_custom_call.1} parent=11 // pred_region
          %143 = vsyncadd [#allocation7], 0
          %s144 = sshll.u32 %s1, 4
          %s145 = int_to_ptr.hbm [resolvable:$true] %s144
          %s146 = sshll.u32 [#allocation6], 4
          %s147 = int_to_ptr.vmem [resolvable:$true] %s146
          %152 = dma.hbm_to_vmem [thread:$0]  %s145, 256, %s147, [#allocation7], 128, 128, 8
        $region16: #{tpu_custom_call.1} parent=11 // pred_fallthru
          _
        // Predicated region
        $region17: #{tpu_custom_call.1} parent=11 // pred_check
          %p153 = pneg %p96
        $region18: #{tpu_custom_call.1} parent=11 // pred_check_branch
          %155 = sbr.rel (%p153) target = $region20
        $region19: #{tpu_custom_call.1} parent=11 // pred_region
          _
        $region20: #{tpu_custom_call.1} parent=11 // pred_fallthru
          _
      $region12: #{tpu_custom_call.1} parent=5 // pred_fallthru
        _
      %p156 = scmp.lt.s32.totalorder %s16, 2
      // Predicated region
      $region21: #{tpu_custom_call.1} parent=5 // pred_check
        %p157 = pneg %p156
      $region22: #{tpu_custom_call.1} parent=5 // pred_check_branch
        %159 = sbr.rel (%p157) target = $region24
      $region23: #{tpu_custom_call.1} parent=5 // pred_region
        // Predicated region
        $region25: #{tpu_custom_call.1} parent=23 // pred_check
          %p160 = pneg %p48
        $region26: #{tpu_custom_call.1} parent=23 // pred_check_branch
          %162 = sbr.rel (%p160) target = $region28
        $region27: #{tpu_custom_call.1} parent=23 // pred_region
          %s163 = sand.u32 %s38, 1
          %s164 = scalar_lea.sflag [#allocation4], %s163
          %s165 = sand.u32 %s38, 1
          %s166 = smul.addr %s165, 256
          %s167 = scalar_lea.vmem [#allocation3], %s166
          %169 = vsyncadd %s164, 0
          %s170 = smul.addr %s23, 32
          %s171 = smul.addr %s170, 8
          %s172 = scalar_lea.hbm %s0, %s171
          %s173 = sshll.u32 %s172, 4
          %s174 = int_to_ptr.hbm [resolvable:$true] %s173
          %s175 = sshll.u32 %s167, 4
          %s176 = int_to_ptr.vmem [resolvable:$true] %s175
          %181 = dma.hbm_to_vmem [thread:$0]  %s174, 4096, %s176, %s164, 128, 128, 8
        $region28: #{tpu_custom_call.1} parent=23 // pred_fallthru
          _
      $region24: #{tpu_custom_call.1} parent=5 // pred_fallthru
        _
      %p182 = scmp.le.s32.totalorder 1, %s16
      %p183 = scmp.lt.s32.totalorder %s16, 3
      %p184 = pnand %p182, %p183
      %p185 = pneg %p184
      // Predicated region
      $region29: #{tpu_custom_call.1} parent=5 // pred_check
        _
      $region30: #{tpu_custom_call.1} parent=5 // pred_check_branch
        %187 = sbr.rel (%p184) target = $region32
      $region31: #{tpu_custom_call.1} parent=5 // pred_region
        %s188 = ssub.s32 %s16, 1
        %s189 = sand.u32 %s41, 1
        %s190 = scalar_lea.sflag [#allocation4], %s189
        %s191 = sand.u32 %s41, 1
        %s192 = smul.addr %s191, 256
        %s193 = scalar_lea.vmem [#allocation3], %s192
        // Predicated region
        $region33: #{tpu_custom_call.1} parent=31 // pred_check
          %p194 = pneg %p54
        $region34: #{tpu_custom_call.1} parent=31 // pred_check_branch
          %196 = sbr.rel (%p194) target = $region36
        $region35: #{tpu_custom_call.1} parent=31 // pred_region
          %198 = dma.done %s190, 4096
        $region36: #{tpu_custom_call.1} parent=31 // pred_fallthru
          _
        // Predicated region
        $region37: #{tpu_custom_call.1} parent=31 // pred_check
          %p199 = pneg %p75
        $region38: #{tpu_custom_call.1} parent=31 // pred_check_branch
          %201 = sbr.rel (%p199) target = $region40
        $region39: #{tpu_custom_call.1} parent=31 // pred_region
          %203 = dma.done [#allocation7], 256
        $region40: #{tpu_custom_call.1} parent=31 // pred_fallthru
          _
        %s204 = sand.u32 %s41, 1
        %s205 = scalar_lea.sflag [#allocation4], %s204
        %s206 = sand.u32 %s41, 1
        %s207 = smul.addr %s206, 256
        %s208 = scalar_lea.vmem [#allocation3], %s207
        %p209 = pneg %p54
        %p210 = pneg %p51
        %p211 = pneg %p75
        %p212 = pneg %p72
        %p213 = pneg %p96
        %p214 = pneg %p93
        %p215 = pneg %p124
        %p216 = pneg %p121
        %s217 = sand.u32 %s111, 1
        %s218 = scalar_lea.sflag [#allocation5], %s217
        %s219 = sand.u32 %s111, 1
        %s220 = smul.addr %s219, 256
        %s221 = scalar_lea.vmem [#allocation8], %s220
        %s222 = smul.u32 16, %s26
        %s223 = smul.u32 %s26, 16
        %vm224 = vcmask 261120
        %225 = vst.msk [vmem:[#allocation2] sm:$0xff] %vm224, 0.0
        %226 = vst.msk [vmem:[#allocation2 + $0x8] sm:$0xff] %vm224, 0.0
        %vm227 = vcmask 254976
        %228 = vst.msk [vmem:[#allocation2 + $0x10] sm:$0x3] %vm227, 0.0
        %s229 = scalar_lea.vmem [#allocation2], 408
        %230 = vst.msk [vmem:[%s229] sm:$0xff] %vm224, 0.0
        %231 = vst.msk [vmem:[%s229 + $0x8] sm:$0xff] %vm224, 0.0
        %232 = vst.msk [vmem:[%s229 + $0x10] sm:$0x3] %vm227, 0.0
        %vm233 = vcmask 253952
        %234 = vst.msk [vmem:[#allocation2] sm:$0x1] %vm233, 0.0
        %235 = vst.msk [vmem:[#allocation2 + $0x18] sm:$0x1] %vm233, 0.0
        %236 = vst.msk [vmem:[#allocation2 + $0x30] sm:$0x1] %vm233, 0.0
        %237 = vst.msk [vmem:[#allocation2 + $0x48] sm:$0x1] %vm233, 0.0
        %238 = vst.msk [vmem:[#allocation2 + $0x60] sm:$0x1] %vm233, 0.0
        %239 = vst.msk [vmem:[#allocation2 + $0x78] sm:$0x1] %vm233, 0.0
        %240 = vst.msk [vmem:[#allocation2 + $0x90] sm:$0x1] %vm233, 0.0
        %241 = vst.msk [vmem:[#allocation2 + $0xa8] sm:$0x1] %vm233, 0.0
        %242 = vst.msk [vmem:[#allocation2 + $0xc0] sm:$0x1] %vm233, 0.0
        %243 = vst.msk [vmem:[#allocation2 + $0xd8] sm:$0x1] %vm233, 0.0
        %244 = vst.msk [vmem:[#allocation2 + $0xf0] sm:$0x1] %vm233, 0.0
        %245 = vst.msk [vmem:[#allocation2 + $0x108] sm:$0x1] %vm233, 0.0
        %246 = vst.msk [vmem:[#allocation2 + $0x120] sm:$0x1] %vm233, 0.0
        %247 = vst.msk [vmem:[#allocation2 + $0x138] sm:$0x1] %vm233, 0.0
        %248 = vst.msk [vmem:[#allocation2 + $0x150] sm:$0x1] %vm233, 0.0
        %249 = vst.msk [vmem:[#allocation2 + $0x168] sm:$0x1] %vm233, 0.0
        %250 = vst.msk [vmem:[#allocation2 + $0x180] sm:$0x1] %vm233, 0.0
        %251 = vst.msk [vmem:[#allocation2 + $0x198] sm:$0x1] %vm233, 0.0
        %252 = vst.msk [vmem:[#allocation2 + $0x11] sm:$0x1] %vm233, 0.0
        %253 = vst.msk [vmem:[#allocation2 + $0x29] sm:$0x1] %vm233, 0.0
        %254 = vst.msk [vmem:[#allocation2 + $0x41] sm:$0x1] %vm233, 0.0
        %255 = vst.msk [vmem:[#allocation2 + $0x59] sm:$0x1] %vm233, 0.0
        %256 = vst.msk [vmem:[#allocation2 + $0x71] sm:$0x1] %vm233, 0.0
        %257 = vst.msk [vmem:[#allocation2 + $0x89] sm:$0x1] %vm233, 0.0
        %258 = vst.msk [vmem:[#allocation2 + $0xa1] sm:$0x1] %vm233, 0.0
        %259 = vst.msk [vmem:[#allocation2 + $0xb9] sm:$0x1] %vm233, 0.0
        %260 = vst.msk [vmem:[#allocation2 + $0xd1] sm:$0x1] %vm233, 0.0
        %261 = vst.msk [vmem:[#allocation2 + $0xe9] sm:$0x1] %vm233, 0.0
        %262 = vst.msk [vmem:[#allocation2 + $0x101] sm:$0x1] %vm233, 0.0
        %263 = vst.msk [vmem:[#allocation2 + $0x119] sm:$0x1] %vm233, 0.0
        %264 = vst.msk [vmem:[#allocation2 + $0x131] sm:$0x1] %vm233, 0.0
        %265 = vst.msk [vmem:[#allocation2 + $0x149] sm:$0x1] %vm233, 0.0
        %266 = vst.msk [vmem:[#allocation2 + $0x161] sm:$0x1] %vm233, 0.0
        %267 = vst.msk [vmem:[#allocation2 + $0x179] sm:$0x1] %vm233, 0.0
        %268 = vst.msk [vmem:[#allocation2 + $0x191] sm:$0x1] %vm233, 0.0
        %269 = vst.msk [vmem:[#allocation2 + $0x1a9] sm:$0x1] %vm233, 0.0
        %s270 = smul.u32 %s223, 16
        %s271 = scalar_lea.vmem %s193, %s270 [#allocation3]
        %v272 = vld [vmem:[%s271] sm:$0xff]
        %v273 = vld [vmem:[%s271 + $0x8] sm:$0xff]
        %v274 = vld [vmem:[%s271 + $0x10] sm:$0xff]
        %v275 = vld [vmem:[%s271 + $0x18] sm:$0xff]
        %v276 = vld [vmem:[%s271 + $0x20] sm:$0xff]
        %v277 = vld [vmem:[%s271 + $0x28] sm:$0xff]
        %v278 = vld [vmem:[%s271 + $0x30] sm:$0xff]
        %v279 = vld [vmem:[%s271 + $0x38] sm:$0xff]
        %v280 = vld [vmem:[%s271 + $0x40] sm:$0xff]
        %v281 = vld [vmem:[%s271 + $0x48] sm:$0xff]
        %v282 = vld [vmem:[%s271 + $0x50] sm:$0xff]
        %v283 = vld [vmem:[%s271 + $0x58] sm:$0xff]
        %v284 = vld [vmem:[%s271 + $0x60] sm:$0xff]
        %v285 = vld [vmem:[%s271 + $0x68] sm:$0xff]
        %v286 = vld [vmem:[%s271 + $0x70] sm:$0xff]
        %v287 = vld [vmem:[%s271 + $0x78] sm:$0xff]
        %s288 = scalar_lea.vmem [#allocation2], 24
        %289 = vst.msk [vmem:[%s288 + $0x1] sm:$0xff] %vm224, %v272
        %290 = vst.msk [vmem:[%s288 + $0x9] sm:$0xff] %vm224, %v273
        %291 = vst.msk [vmem:[%s288 + $0x19] sm:$0xff] %vm224, %v274
        %292 = vst.msk [vmem:[%s288 + $0x21] sm:$0xff] %vm224, %v275
        %293 = vst.msk [vmem:[%s288 + $0x31] sm:$0xff] %vm224, %v276
        %294 = vst.msk [vmem:[%s288 + $0x39] sm:$0xff] %vm224, %v277
        %295 = vst.msk [vmem:[%s288 + $0x49] sm:$0xff] %vm224, %v278
        %296 = vst.msk [vmem:[%s288 + $0x51] sm:$0xff] %vm224, %v279
        %297 = vst.msk [vmem:[%s288 + $0x61] sm:$0xff] %vm224, %v280
        %298 = vst.msk [vmem:[%s288 + $0x69] sm:$0xff] %vm224, %v281
        %299 = vst.msk [vmem:[%s288 + $0x79] sm:$0xff] %vm224, %v282
        %300 = vst.msk [vmem:[%s288 + $0x81] sm:$0xff] %vm224, %v283
        %301 = vst.msk [vmem:[%s288 + $0x91] sm:$0xff] %vm224, %v284
        %302 = vst.msk [vmem:[%s288 + $0x99] sm:$0xff] %vm224, %v285
        %303 = vst.msk [vmem:[%s288 + $0xa9] sm:$0xff] %vm224, %v286
        %304 = vst.msk [vmem:[%s288 + $0xb1] sm:$0xff] %vm224, %v287
        %s305 = sadd.s32 %s223, 8
        %s306 = smul.u32 %s305, 16
        %s307 = scalar_lea.vmem %s193, %s306 [#allocation3]
        %v308 = vld [vmem:[%s307] sm:$0xff]
        %v309 = vld [vmem:[%s307 + $0x8] sm:$0xff]
        %v310 = vld [vmem:[%s307 + $0x10] sm:$0xff]
        %v311 = vld [vmem:[%s307 + $0x18] sm:$0xff]
        %v312 = vld [vmem:[%s307 + $0x20] sm:$0xff]
        %v313 = vld [vmem:[%s307 + $0x28] sm:$0xff]
        %v314 = vld [vmem:[%s307 + $0x30] sm:$0xff]
        %v315 = vld [vmem:[%s307 + $0x38] sm:$0xff]
        %v316 = vld [vmem:[%s307 + $0x40] sm:$0xff]
        %v317 = vld [vmem:[%s307 + $0x48] sm:$0xff]
        %v318 = vld [vmem:[%s307 + $0x50] sm:$0xff]
        %v319 = vld [vmem:[%s307 + $0x58] sm:$0xff]
        %v320 = vld [vmem:[%s307 + $0x60] sm:$0xff]
        %v321 = vld [vmem:[%s307 + $0x68] sm:$0xff]
        %v322 = vld [vmem:[%s307 + $0x70] sm:$0xff]
        %v323 = vld [vmem:[%s307 + $0x78] sm:$0xff]
        %s324 = scalar_lea.vmem [#allocation2], 216
        %325 = vst.msk [vmem:[%s324 + $0x1] sm:$0xff] %vm224, %v308
        %326 = vst.msk [vmem:[%s324 + $0x9] sm:$0xff] %vm224, %v309
        %327 = vst.msk [vmem:[%s324 + $0x19] sm:$0xff] %vm224, %v310
        %328 = vst.msk [vmem:[%s324 + $0x21] sm:$0xff] %vm224, %v311
        %329 = vst.msk [vmem:[%s324 + $0x31] sm:$0xff] %vm224, %v312
        %330 = vst.msk [vmem:[%s324 + $0x39] sm:$0xff] %vm224, %v313
        %331 = vst.msk [vmem:[%s324 + $0x49] sm:$0xff] %vm224, %v314
        %332 = vst.msk [vmem:[%s324 + $0x51] sm:$0xff] %vm224, %v315
        %333 = vst.msk [vmem:[%s324 + $0x61] sm:$0xff] %vm224, %v316
        %334 = vst.msk [vmem:[%s324 + $0x69] sm:$0xff] %vm224, %v317
        %335 = vst.msk [vmem:[%s324 + $0x79] sm:$0xff] %vm224, %v318
        %336 = vst.msk [vmem:[%s324 + $0x81] sm:$0xff] %vm224, %v319
        %337 = vst.msk [vmem:[%s324 + $0x91] sm:$0xff] %vm224, %v320
        %338 = vst.msk [vmem:[%s324 + $0x99] sm:$0xff] %vm224, %v321
        %339 = vst.msk [vmem:[%s324 + $0xa9] sm:$0xff] %vm224, %v322
        %340 = vst.msk [vmem:[%s324 + $0xb1] sm:$0xff] %vm224, %v323
        %p341 = scmp.gt.s32.totalorder %s26, 0
        // Predicated region
        $region41: #{tpu_custom_call.1} parent=31 // pred_check
          %p342 = pneg %p341
        $region42: #{tpu_custom_call.1} parent=31 // pred_check_branch
          %344 = sbr.rel (%p342) target = $region44
        $region43: #{tpu_custom_call.1} parent=31 // pred_region
          %s345 = ssub.s32 %s223, 1
          %s346 = smul.u32 %s345, 16
          %s347 = scalar_lea.vmem %s193, %s346 [#allocation3]
          %v348 = vld [vmem:[%s347] sm:$0xff]
          %v349 = vld [vmem:[%s347 + $0x8] sm:$0xff]
          %350 = vst.msk [vmem:[#allocation2 + $0x1] sm:$0xff] %vm224, %v348
          %351 = vst.msk [vmem:[#allocation2 + $0x9] sm:$0xff] %vm224, %v349
        $region44: #{tpu_custom_call.1} parent=31 // pred_fallthru
          _
        %p352 = scmp.lt.s32.totalorder %s26, 0
        // Predicated region
        $region45: #{tpu_custom_call.1} parent=31 // pred_check
          %p353 = pneg %p352
        $region46: #{tpu_custom_call.1} parent=31 // pred_check_branch
          %355 = sbr.rel (%p353) target = $region48
        $region47: #{tpu_custom_call.1} parent=31 // pred_region
          %s356 = sadd.s32 %s223, 16
          %s357 = smul.u32 %s356, 16
          %s358 = scalar_lea.vmem %s193, %s357 [#allocation3]
          %v359 = vld [vmem:[%s358] sm:$0xff]
          %v360 = vld [vmem:[%s358 + $0x8] sm:$0xff]
          %361 = vst.msk [vmem:[%s229 + $0x1] sm:$0xff] %vm224, %v359
          %362 = vst.msk [vmem:[%s229 + $0x9] sm:$0xff] %vm224, %v360
        $region48: #{tpu_custom_call.1} parent=31 // pred_fallthru
          _
        %v363 = vld [vmem:[#allocation6] sm:$0xff]
        %v364 = vld [vmem:[#allocation6 + $0x8] sm:$0x1]
        %v365 = vld [vmem:[%s2] sm:$0x1]
        %v366 = vld [vmem:[#allocation2] sm:$0xff]
        %v367 = vld [vmem:[#allocation2 + $0x8] sm:$0xff]
        %v368 = vld [vmem:[#allocation2 + $0x18] sm:$0xff]
        %v369 = vld [vmem:[#allocation2 + $0x20] sm:$0xff]
        %v370 = vld [vmem:[#allocation2 + $0x30] sm:$0xff]
        %v371 = vld [vmem:[#allocation2 + $0x38] sm:$0xff]
        %v372 = vld [vmem:[#allocation2 + $0x48] sm:$0xff]
        %v373 = vld [vmem:[#allocation2 + $0x50] sm:$0xff]
        %v374 = vld [vmem:[#allocation2 + $0x60] sm:$0xff]
        %v375 = vld [vmem:[#allocation2 + $0x68] sm:$0xff]
        %v376 = vld [vmem:[#allocation2 + $0x78] sm:$0xff]
        %v377 = vld [vmem:[#allocation2 + $0x80] sm:$0xff]
        %v378 = vld [vmem:[#allocation2 + $0x90] sm:$0xff]
        %v379 = vld [vmem:[#allocation2 + $0x98] sm:$0xff]
        %v380 = vld [vmem:[#allocation2 + $0xa8] sm:$0xff]
        %v381 = vld [vmem:[#allocation2 + $0xb0] sm:$0xff]
        %v382 = vperm.slane %v363, 0
        %v383 = vmul.f32 %v366, %v382
        %v384 = vmul.f32 %v367, %v382
        %v385 = vmul.f32 %v368, %v382
        %v386 = vmul.f32 %v369, %v382
        %v387 = vmul.f32 %v370, %v382
        %v388 = vmul.f32 %v371, %v382
        %v389 = vmul.f32 %v372, %v382
        %v390 = vmul.f32 %v373, %v382
        %v391 = vmul.f32 %v374, %v382
        %v392 = vmul.f32 %v375, %v382
        %v393 = vmul.f32 %v376, %v382
        %v394 = vmul.f32 %v377, %v382
        %v395 = vmul.f32 %v378, %v382
        %v396 = vmul.f32 %v379, %v382
        %v397 = vmul.f32 %v380, %v382
        %v398 = vmul.f32 %v381, %v382
        %v399 = vadd.f32 %v383, 0.0
        %v400 = vadd.f32 %v384, 0.0
        %v401 = vadd.f32 %v385, 0.0
        %v402 = vadd.f32 %v386, 0.0
        %v403 = vadd.f32 %v387, 0.0
        %v404 = vadd.f32 %v388, 0.0
        %v405 = vadd.f32 %v389, 0.0
        %v406 = vadd.f32 %v390, 0.0
        %v407 = vadd.f32 %v391, 0.0
        %v408 = vadd.f32 %v392, 0.0
        %v409 = vadd.f32 %v393, 0.0
        %v410 = vadd.f32 %v394, 0.0
        %v411 = vadd.f32 %v395, 0.0
        %v412 = vadd.f32 %v396, 0.0
        %v413 = vadd.f32 %v397, 0.0
        %v414 = vadd.f32 %v398, 0.0
        %v415 = vld [vmem:[#allocation2 + $0x1] sm:$0xff]
        %v416 = vld [vmem:[#allocation2 + $0x9] sm:$0xff]
        %v417 = vld [vmem:[#allocation2 + $0x19] sm:$0xff]
        %v418 = vld [vmem:[#allocation2 + $0x21] sm:$0xff]
        %v419 = vld [vmem:[#allocation2 + $0x31] sm:$0xff]
        %v420 = vld [vmem:[#allocation2 + $0x39] sm:$0xff]
        %v421 = vld [vmem:[#allocation2 + $0x49] sm:$0xff]
        %v422 = vld [vmem:[#allocation2 + $0x51] sm:$0xff]
        %v423 = vld [vmem:[#allocation2 + $0x61] sm:$0xff]
        %v424 = vld [vmem:[#allocation2 + $0x69] sm:$0xff]
        %v425 = vld [vmem:[#allocation2 + $0x79] sm:$0xff]
        %v426 = vld [vmem:[#allocation2 + $0x81] sm:$0xff]
        %v427 = vld [vmem:[#allocation2 + $0x91] sm:$0xff]
        %v428 = vld [vmem:[#allocation2 + $0x99] sm:$0xff]
        %v429 = vld [vmem:[#allocation2 + $0xa9] sm:$0xff]
        %v430 = vld [vmem:[#allocation2 + $0xb1] sm:$0xff]
        %v431 = vperm.slane %v363, 1
        %v432 = vmul.f32 %v415, %v431
        %v433 = vmul.f32 %v416, %v431
        %v434 = vmul.f32 %v417, %v431
        %v435 = vmul.f32 %v418, %v431
        %v436 = vmul.f32 %v419, %v431
        %v437 = vmul.f32 %v420, %v431
        %v438 = vmul.f32 %v421, %v431
        %v439 = vmul.f32 %v422, %v431
        %v440 = vmul.f32 %v423, %v431
        %v441 = vmul.f32 %v424, %v431
        %v442 = vmul.f32 %v425, %v431
        %v443 = vmul.f32 %v426, %v431
        %v444 = vmul.f32 %v427, %v431
        %v445 = vmul.f32 %v428, %v431
        %v446 = vmul.f32 %v429, %v431
        %v447 = vmul.f32 %v430, %v431
        %v448 = vadd.f32 %v399, %v432
        %v449 = vadd.f32 %v400, %v433
        %v450 = vadd.f32 %v401, %v434
        %v451 = vadd.f32 %v402, %v435
        %v452 = vadd.f32 %v403, %v436
        %v453 = vadd.f32 %v404, %v437
        %v454 = vadd.f32 %v405, %v438
        %v455 = vadd.f32 %v406, %v439
        %v456 = vadd.f32 %v407, %v440
        %v457 = vadd.f32 %v408, %v441
        %v458 = vadd.f32 %v409, %v442
        %v459 = vadd.f32 %v410, %v443
        %v460 = vadd.f32 %v411, %v444
        %v461 = vadd.f32 %v412, %v445
        %v462 = vadd.f32 %v413, %v446
        %v463 = vadd.f32 %v414, %v447
        %v464 = vld [vmem:[#allocation2 + $0x2] sm:$0xff]
        %v465 = vld [vmem:[#allocation2 + $0xa] sm:$0xff]
        %v466 = vld [vmem:[#allocation2 + $0x1a] sm:$0xff]
        %v467 = vld [vmem:[#allocation2 + $0x22] sm:$0xff]
        %v468 = vld [vmem:[#allocation2 + $0x32] sm:$0xff]
        %v469 = vld [vmem:[#allocation2 + $0x3a] sm:$0xff]
        %v470 = vld [vmem:[#allocation2 + $0x4a] sm:$0xff]
        %v471 = vld [vmem:[#allocation2 + $0x52] sm:$0xff]
        %v472 = vld [vmem:[#allocation2 + $0x62] sm:$0xff]
        %v473 = vld [vmem:[#allocation2 + $0x6a] sm:$0xff]
        %v474 = vld [vmem:[#allocation2 + $0x7a] sm:$0xff]
        %v475 = vld [vmem:[#allocation2 + $0x82] sm:$0xff]
        %v476 = vld [vmem:[#allocation2 + $0x92] sm:$0xff]
        %v477 = vld [vmem:[#allocation2 + $0x9a] sm:$0xff]
        %v478 = vld [vmem:[#allocation2 + $0xaa] sm:$0xff]
        %v479 = vld [vmem:[#allocation2 + $0xb2] sm:$0xff]
        %v480 = vperm.slane %v363, 2
        %v481 = vmul.f32 %v464, %v480
        %v482 = vmul.f32 %v465, %v480
        %v483 = vmul.f32 %v466, %v480
        %v484 = vmul.f32 %v467, %v480
        %v485 = vmul.f32 %v468, %v480
        %v486 = vmul.f32 %v469, %v480
        %v487 = vmul.f32 %v470, %v480
        %v488 = vmul.f32 %v471, %v480
        %v489 = vmul.f32 %v472, %v480
        %v490 = vmul.f32 %v473, %v480
        %v491 = vmul.f32 %v474, %v480
        %v492 = vmul.f32 %v475, %v480
        %v493 = vmul.f32 %v476, %v480
        %v494 = vmul.f32 %v477, %v480
        %v495 = vmul.f32 %v478, %v480
        %v496 = vmul.f32 %v479, %v480
        %v497 = vadd.f32 %v448, %v481
        %v498 = vadd.f32 %v449, %v482
        %v499 = vadd.f32 %v450, %v483
        %v500 = vadd.f32 %v451, %v484
        %v501 = vadd.f32 %v452, %v485
        %v502 = vadd.f32 %v453, %v486
        %v503 = vadd.f32 %v454, %v487
        %v504 = vadd.f32 %v455, %v488
        %v505 = vadd.f32 %v456, %v489
        %v506 = vadd.f32 %v457, %v490
        %v507 = vadd.f32 %v458, %v491
        %v508 = vadd.f32 %v459, %v492
        %v509 = vadd.f32 %v460, %v493
        %v510 = vadd.f32 %v461, %v494
        %v511 = vadd.f32 %v462, %v495
        %v512 = vadd.f32 %v463, %v496
        %v513 = vld [vmem:[%s288] sm:$0xff]
        %v514 = vld [vmem:[%s288 + $0x8] sm:$0xff]
        %v515 = vld [vmem:[%s288 + $0x18] sm:$0xff]
        %v516 = vld [vmem:[%s288 + $0x20] sm:$0xff]
        %v517 = vld [vmem:[%s288 + $0x30] sm:$0xff]
        %v518 = vld [vmem:[%s288 + $0x38] sm:$0xff]
        %v519 = vld [vmem:[%s288 + $0x48] sm:$0xff]
        %v520 = vld [vmem:[%s288 + $0x50] sm:$0xff]
        %v521 = vld [vmem:[%s288 + $0x60] sm:$0xff]
        %v522 = vld [vmem:[%s288 + $0x68] sm:$0xff]
        %v523 = vld [vmem:[%s288 + $0x78] sm:$0xff]
        %v524 = vld [vmem:[%s288 + $0x80] sm:$0xff]
        %v525 = vld [vmem:[%s288 + $0x90] sm:$0xff]
        %v526 = vld [vmem:[%s288 + $0x98] sm:$0xff]
        %v527 = vld [vmem:[%s288 + $0xa8] sm:$0xff]
        %v528 = vld [vmem:[%s288 + $0xb0] sm:$0xff]
        %v529 = vperm.slane %v363, 3
        %v530 = vmul.f32 %v513, %v529
        %v531 = vmul.f32 %v514, %v529
        %v532 = vmul.f32 %v515, %v529
        %v533 = vmul.f32 %v516, %v529
        %v534 = vmul.f32 %v517, %v529
        %v535 = vmul.f32 %v518, %v529
        %v536 = vmul.f32 %v519, %v529
        %v537 = vmul.f32 %v520, %v529
        %v538 = vmul.f32 %v521, %v529
        %v539 = vmul.f32 %v522, %v529
        %v540 = vmul.f32 %v523, %v529
        %v541 = vmul.f32 %v524, %v529
        %v542 = vmul.f32 %v525, %v529
        %v543 = vmul.f32 %v526, %v529
        %v544 = vmul.f32 %v527, %v529
        %v545 = vmul.f32 %v528, %v529
        %v546 = vadd.f32 %v497, %v530
        %v547 = vadd.f32 %v498, %v531
        %v548 = vadd.f32 %v499, %v532
        %v549 = vadd.f32 %v500, %v533
        %v550 = vadd.f32 %v501, %v534
        %v551 = vadd.f32 %v502, %v535
        %v552 = vadd.f32 %v503, %v536
        %v553 = vadd.f32 %v504, %v537
        %v554 = vadd.f32 %v505, %v538
        %v555 = vadd.f32 %v506, %v539
        %v556 = vadd.f32 %v507, %v540
        %v557 = vadd.f32 %v508, %v541
        %v558 = vadd.f32 %v509, %v542
        %v559 = vadd.f32 %v510, %v543
        %v560 = vadd.f32 %v511, %v544
        %v561 = vadd.f32 %v512, %v545
        %v562 = vld [vmem:[%s288 + $0x1] sm:$0xff]
        %v563 = vld [vmem:[%s288 + $0x9] sm:$0xff]
        %v564 = vld [vmem:[%s288 + $0x19] sm:$0xff]
        %v565 = vld [vmem:[%s288 + $0x21] sm:$0xff]
        %v566 = vld [vmem:[%s288 + $0x31] sm:$0xff]
        %v567 = vld [vmem:[%s288 + $0x39] sm:$0xff]
        %v568 = vld [vmem:[%s288 + $0x49] sm:$0xff]
        %v569 = vld [vmem:[%s288 + $0x51] sm:$0xff]
        %v570 = vld [vmem:[%s288 + $0x61] sm:$0xff]
        %v571 = vld [vmem:[%s288 + $0x69] sm:$0xff]
        %v572 = vld [vmem:[%s288 + $0x79] sm:$0xff]
        %v573 = vld [vmem:[%s288 + $0x81] sm:$0xff]
        %v574 = vld [vmem:[%s288 + $0x91] sm:$0xff]
        %v575 = vld [vmem:[%s288 + $0x99] sm:$0xff]
        %v576 = vld [vmem:[%s288 + $0xa9] sm:$0xff]
        %v577 = vld [vmem:[%s288 + $0xb1] sm:$0xff]
        %v578 = vperm.slane %v363, 4
        %v579 = vmul.f32 %v562, %v578
        %v580 = vmul.f32 %v563, %v578
        %v581 = vmul.f32 %v564, %v578
        %v582 = vmul.f32 %v565, %v578
        %v583 = vmul.f32 %v566, %v578
        %v584 = vmul.f32 %v567, %v578
        %v585 = vmul.f32 %v568, %v578
        %v586 = vmul.f32 %v569, %v578
        %v587 = vmul.f32 %v570, %v578
        %v588 = vmul.f32 %v571, %v578
        %v589 = vmul.f32 %v572, %v578
        %v590 = vmul.f32 %v573, %v578
        %v591 = vmul.f32 %v574, %v578
        %v592 = vmul.f32 %v575, %v578
        %v593 = vmul.f32 %v576, %v578
        %v594 = vmul.f32 %v577, %v578
        %v595 = vadd.f32 %v546, %v579
        %v596 = vadd.f32 %v547, %v580
        %v597 = vadd.f32 %v548, %v581
        %v598 = vadd.f32 %v549, %v582
        %v599 = vadd.f32 %v550, %v583
        %v600 = vadd.f32 %v551, %v584
        %v601 = vadd.f32 %v552, %v585
        %v602 = vadd.f32 %v553, %v586
        %v603 = vadd.f32 %v554, %v587
        %v604 = vadd.f32 %v555, %v588
        %v605 = vadd.f32 %v556, %v589
        %v606 = vadd.f32 %v557, %v590
        %v607 = vadd.f32 %v558, %v591
        %v608 = vadd.f32 %v559, %v592
        %v609 = vadd.f32 %v560, %v593
        %v610 = vadd.f32 %v561, %v594
        %v611 = vld [vmem:[%s288 + $0x2] sm:$0xff]
        %v612 = vld [vmem:[%s288 + $0xa] sm:$0xff]
        %v613 = vld [vmem:[%s288 + $0x1a] sm:$0xff]
        %v614 = vld [vmem:[%s288 + $0x22] sm:$0xff]
        %v615 = vld [vmem:[%s288 + $0x32] sm:$0xff]
        %v616 = vld [vmem:[%s288 + $0x3a] sm:$0xff]
        %v617 = vld [vmem:[%s288 + $0x4a] sm:$0xff]
        %v618 = vld [vmem:[%s288 + $0x52] sm:$0xff]
        %v619 = vld [vmem:[%s288 + $0x62] sm:$0xff]
        %v620 = vld [vmem:[%s288 + $0x6a] sm:$0xff]
        %v621 = vld [vmem:[%s288 + $0x7a] sm:$0xff]
        %v622 = vld [vmem:[%s288 + $0x82] sm:$0xff]
        %v623 = vld [vmem:[%s288 + $0x92] sm:$0xff]
        %v624 = vld [vmem:[%s288 + $0x9a] sm:$0xff]
        %v625 = vld [vmem:[%s288 + $0xaa] sm:$0xff]
        %v626 = vld [vmem:[%s288 + $0xb2] sm:$0xff]
        %v627 = vperm.slane %v363, 5
        %v628 = vmul.f32 %v611, %v627
        %v629 = vmul.f32 %v612, %v627
        %v630 = vmul.f32 %v613, %v627
        %v631 = vmul.f32 %v614, %v627
        %v632 = vmul.f32 %v615, %v627
        %v633 = vmul.f32 %v616, %v627
        %v634 = vmul.f32 %v617, %v627
        %v635 = vmul.f32 %v618, %v627
        %v636 = vmul.f32 %v619, %v627
        %v637 = vmul.f32 %v620, %v627
        %v638 = vmul.f32 %v621, %v627
        %v639 = vmul.f32 %v622, %v627
        %v640 = vmul.f32 %v623, %v627
        %v641 = vmul.f32 %v624, %v627
        %v642 = vmul.f32 %v625, %v627
        %v643 = vmul.f32 %v626, %v627
        %v644 = vadd.f32 %v595, %v628
        %v645 = vadd.f32 %v596, %v629
        %v646 = vadd.f32 %v597, %v630
        %v647 = vadd.f32 %v598, %v631
        %v648 = vadd.f32 %v599, %v632
        %v649 = vadd.f32 %v600, %v633
        %v650 = vadd.f32 %v601, %v634
        %v651 = vadd.f32 %v602, %v635
        %v652 = vadd.f32 %v603, %v636
        %v653 = vadd.f32 %v604, %v637
        %v654 = vadd.f32 %v605, %v638
        %v655 = vadd.f32 %v606, %v639
        %v656 = vadd.f32 %v607, %v640
        %v657 = vadd.f32 %v608, %v641
        %v658 = vadd.f32 %v609, %v642
        %v659 = vadd.f32 %v610, %v643
        %s660 = scalar_lea.vmem [#allocation2], 48
        %v661 = vld [vmem:[%s660] sm:$0xff]
        %v662 = vld [vmem:[%s660 + $0x8] sm:$0xff]
        %v663 = vld [vmem:[%s660 + $0x18] sm:$0xff]
        %v664 = vld [vmem:[%s660 + $0x20] sm:$0xff]
        %v665 = vld [vmem:[%s660 + $0x30] sm:$0xff]
        %v666 = vld [vmem:[%s660 + $0x38] sm:$0xff]
        %v667 = vld [vmem:[%s660 + $0x48] sm:$0xff]
        %v668 = vld [vmem:[%s660 + $0x50] sm:$0xff]
        %v669 = vld [vmem:[%s660 + $0x60] sm:$0xff]
        %v670 = vld [vmem:[%s660 + $0x68] sm:$0xff]
        %v671 = vld [vmem:[%s660 + $0x78] sm:$0xff]
        %v672 = vld [vmem:[%s660 + $0x80] sm:$0xff]
        %v673 = vld [vmem:[%s660 + $0x90] sm:$0xff]
        %v674 = vld [vmem:[%s660 + $0x98] sm:$0xff]
        %v675 = vld [vmem:[%s660 + $0xa8] sm:$0xff]
        %v676 = vld [vmem:[%s660 + $0xb0] sm:$0xff]
        %v677 = vperm.slane %v363, 6
        %v678 = vmul.f32 %v661, %v677
        %v679 = vmul.f32 %v662, %v677
        %v680 = vmul.f32 %v663, %v677
        %v681 = vmul.f32 %v664, %v677
        %v682 = vmul.f32 %v665, %v677
        %v683 = vmul.f32 %v666, %v677
        %v684 = vmul.f32 %v667, %v677
        %v685 = vmul.f32 %v668, %v677
        %v686 = vmul.f32 %v669, %v677
        %v687 = vmul.f32 %v670, %v677
        %v688 = vmul.f32 %v671, %v677
        %v689 = vmul.f32 %v672, %v677
        %v690 = vmul.f32 %v673, %v677
        %v691 = vmul.f32 %v674, %v677
        %v692 = vmul.f32 %v675, %v677
        %v693 = vmul.f32 %v676, %v677
        %v694 = vadd.f32 %v644, %v678
        %v695 = vadd.f32 %v645, %v679
        %v696 = vadd.f32 %v646, %v680
        %v697 = vadd.f32 %v647, %v681
        %v698 = vadd.f32 %v648, %v682
        %v699 = vadd.f32 %v649, %v683
        %v700 = vadd.f32 %v650, %v684
        %v701 = vadd.f32 %v651, %v685
        %v702 = vadd.f32 %v652, %v686
        %v703 = vadd.f32 %v653, %v687
        %v704 = vadd.f32 %v654, %v688
        %v705 = vadd.f32 %v655, %v689
        %v706 = vadd.f32 %v656, %v690
        %v707 = vadd.f32 %v657, %v691
        %v708 = vadd.f32 %v658, %v692
        %v709 = vadd.f32 %v659, %v693
        %v710 = vld [vmem:[%s660 + $0x1] sm:$0xff]
        %v711 = vld [vmem:[%s660 + $0x9] sm:$0xff]
        %v712 = vld [vmem:[%s660 + $0x19] sm:$0xff]
        %v713 = vld [vmem:[%s660 + $0x21] sm:$0xff]
        %v714 = vld [vmem:[%s660 + $0x31] sm:$0xff]
        %v715 = vld [vmem:[%s660 + $0x39] sm:$0xff]
        %v716 = vld [vmem:[%s660 + $0x49] sm:$0xff]
        %v717 = vld [vmem:[%s660 + $0x51] sm:$0xff]
        %v718 = vld [vmem:[%s660 + $0x61] sm:$0xff]
        %v719 = vld [vmem:[%s660 + $0x69] sm:$0xff]
        %v720 = vld [vmem:[%s660 + $0x79] sm:$0xff]
        %v721 = vld [vmem:[%s660 + $0x81] sm:$0xff]
        %v722 = vld [vmem:[%s660 + $0x91] sm:$0xff]
        %v723 = vld [vmem:[%s660 + $0x99] sm:$0xff]
        %v724 = vld [vmem:[%s660 + $0xa9] sm:$0xff]
        %v725 = vld [vmem:[%s660 + $0xb1] sm:$0xff]
        %v726 = vperm.slane %v363, 7
        %v727 = vmul.f32 %v710, %v726
        %v728 = vmul.f32 %v711, %v726
        %v729 = vmul.f32 %v712, %v726
        %v730 = vmul.f32 %v713, %v726
        %v731 = vmul.f32 %v714, %v726
        %v732 = vmul.f32 %v715, %v726
        %v733 = vmul.f32 %v716, %v726
        %v734 = vmul.f32 %v717, %v726
        %v735 = vmul.f32 %v718, %v726
        %v736 = vmul.f32 %v719, %v726
        %v737 = vmul.f32 %v720, %v726
        %v738 = vmul.f32 %v721, %v726
        %v739 = vmul.f32 %v722, %v726
        %v740 = vmul.f32 %v723, %v726
        %v741 = vmul.f32 %v724, %v726
        %v742 = vmul.f32 %v725, %v726
        %v743 = vadd.f32 %v694, %v727
        %v744 = vadd.f32 %v695, %v728
        %v745 = vadd.f32 %v696, %v729
        %v746 = vadd.f32 %v697, %v730
        %v747 = vadd.f32 %v698, %v731
        %v748 = vadd.f32 %v699, %v732
        %v749 = vadd.f32 %v700, %v733
        %v750 = vadd.f32 %v701, %v734
        %v751 = vadd.f32 %v702, %v735
        %v752 = vadd.f32 %v703, %v736
        %v753 = vadd.f32 %v704, %v737
        %v754 = vadd.f32 %v705, %v738
        %v755 = vadd.f32 %v706, %v739
        %v756 = vadd.f32 %v707, %v740
        %v757 = vadd.f32 %v708, %v741
        %v758 = vadd.f32 %v709, %v742
        %v759 = vld [vmem:[%s660 + $0x2] sm:$0xff]
        %v760 = vld [vmem:[%s660 + $0xa] sm:$0xff]
        %v761 = vld [vmem:[%s660 + $0x1a] sm:$0xff]
        %v762 = vld [vmem:[%s660 + $0x22] sm:$0xff]
        %v763 = vld [vmem:[%s660 + $0x32] sm:$0xff]
        %v764 = vld [vmem:[%s660 + $0x3a] sm:$0xff]
        %v765 = vld [vmem:[%s660 + $0x4a] sm:$0xff]
        %v766 = vld [vmem:[%s660 + $0x52] sm:$0xff]
        %v767 = vld [vmem:[%s660 + $0x62] sm:$0xff]
        %v768 = vld [vmem:[%s660 + $0x6a] sm:$0xff]
        %v769 = vld [vmem:[%s660 + $0x7a] sm:$0xff]
        %v770 = vld [vmem:[%s660 + $0x82] sm:$0xff]
        %v771 = vld [vmem:[%s660 + $0x92] sm:$0xff]
        %v772 = vld [vmem:[%s660 + $0x9a] sm:$0xff]
        %v773 = vld [vmem:[%s660 + $0xaa] sm:$0xff]
        %v774 = vld [vmem:[%s660 + $0xb2] sm:$0xff]
        %v775 = vperm.slane %v364, 0
        %v776 = vmul.f32 %v759, %v775
        %v777 = vmul.f32 %v760, %v775
        %v778 = vmul.f32 %v761, %v775
        %v779 = vmul.f32 %v762, %v775
        %v780 = vmul.f32 %v763, %v775
        %v781 = vmul.f32 %v764, %v775
        %v782 = vmul.f32 %v765, %v775
        %v783 = vmul.f32 %v766, %v775
        %v784 = vmul.f32 %v767, %v775
        %v785 = vmul.f32 %v768, %v775
        %v786 = vmul.f32 %v769, %v775
        %v787 = vmul.f32 %v770, %v775
        %v788 = vmul.f32 %v771, %v775
        %v789 = vmul.f32 %v772, %v775
        %v790 = vmul.f32 %v773, %v775
        %v791 = vmul.f32 %v774, %v775
        %v792 = vadd.f32 %v743, %v776
        %v793 = vadd.f32 %v744, %v777
        %v794 = vadd.f32 %v745, %v778
        %v795 = vadd.f32 %v746, %v779
        %v796 = vadd.f32 %v747, %v780
        %v797 = vadd.f32 %v748, %v781
        %v798 = vadd.f32 %v749, %v782
        %v799 = vadd.f32 %v750, %v783
        %v800 = vadd.f32 %v751, %v784
        %v801 = vadd.f32 %v752, %v785
        %v802 = vadd.f32 %v753, %v786
        %v803 = vadd.f32 %v754, %v787
        %v804 = vadd.f32 %v755, %v788
        %v805 = vadd.f32 %v756, %v789
        %v806 = vadd.f32 %v757, %v790
        %v807 = vadd.f32 %v758, %v791
        %v809 = vperm.slane %v365, 0
        %v811 = vadd.f32 %v792, %v809
        %v812 = vadd.f32 %v793, %v809
        %v813 = vadd.f32 %v794, %v809
        %v814 = vadd.f32 %v795, %v809
        %v815 = vadd.f32 %v796, %v809
        %v816 = vadd.f32 %v797, %v809
        %v817 = vadd.f32 %v798, %v809
        %v818 = vadd.f32 %v799, %v809
        %v819 = vadd.f32 %v800, %v809
        %v820 = vadd.f32 %v801, %v809
        %v821 = vadd.f32 %v802, %v809
        %v822 = vadd.f32 %v803, %v809
        %v823 = vadd.f32 %v804, %v809
        %v824 = vadd.f32 %v805, %v809
        %v825 = vadd.f32 %v806, %v809
        %v826 = vadd.f32 %v807, %v809
        %827 = vst.msk [vmem:[%s221] sm:$0xff] %vm224, %v811
        %828 = vst.msk [vmem:[%s221 + $0x8] sm:$0xff] %vm224, %v812
        %829 = vst.msk [vmem:[%s221 + $0x10] sm:$0xff] %vm224, %v813
        %830 = vst.msk [vmem:[%s221 + $0x18] sm:$0xff] %vm224, %v814
        %831 = vst.msk [vmem:[%s221 + $0x20] sm:$0xff] %vm224, %v815
        %832 = vst.msk [vmem:[%s221 + $0x28] sm:$0xff] %vm224, %v816
        %833 = vst.msk [vmem:[%s221 + $0x30] sm:$0xff] %vm224, %v817
        %834 = vst.msk [vmem:[%s221 + $0x38] sm:$0xff] %vm224, %v818
        %835 = vst.msk [vmem:[%s221 + $0x40] sm:$0xff] %vm224, %v819
        %836 = vst.msk [vmem:[%s221 + $0x48] sm:$0xff] %vm224, %v820
        %837 = vst.msk [vmem:[%s221 + $0x50] sm:$0xff] %vm224, %v821
        %838 = vst.msk [vmem:[%s221 + $0x58] sm:$0xff] %vm224, %v822
        %839 = vst.msk [vmem:[%s221 + $0x60] sm:$0xff] %vm224, %v823
        %840 = vst.msk [vmem:[%s221 + $0x68] sm:$0xff] %vm224, %v824
        %841 = vst.msk [vmem:[%s221 + $0x70] sm:$0xff] %vm224, %v825
        %842 = vst.msk [vmem:[%s221 + $0x78] sm:$0xff] %vm224, %v826
        %s843 = scalar_lea.vmem [#allocation2], 192
        %v844 = vld [vmem:[%s843] sm:$0xff]
        %v845 = vld [vmem:[%s843 + $0x8] sm:$0xff]
        %v846 = vld [vmem:[%s843 + $0x18] sm:$0xff]
        %v847 = vld [vmem:[%s843 + $0x20] sm:$0xff]
        %v848 = vld [vmem:[%s843 + $0x30] sm:$0xff]
        %v849 = vld [vmem:[%s843 + $0x38] sm:$0xff]
        %v850 = vld [vmem:[%s843 + $0x48] sm:$0xff]
        %v851 = vld [vmem:[%s843 + $0x50] sm:$0xff]
        %v852 = vld [vmem:[%s843 + $0x60] sm:$0xff]
        %v853 = vld [vmem:[%s843 + $0x68] sm:$0xff]
        %v854 = vld [vmem:[%s843 + $0x78] sm:$0xff]
        %v855 = vld [vmem:[%s843 + $0x80] sm:$0xff]
        %v856 = vld [vmem:[%s843 + $0x90] sm:$0xff]
        %v857 = vld [vmem:[%s843 + $0x98] sm:$0xff]
        %v858 = vld [vmem:[%s843 + $0xa8] sm:$0xff]
        %v859 = vld [vmem:[%s843 + $0xb0] sm:$0xff]
        %v860 = vmul.f32 %v844, %v382
        %v861 = vmul.f32 %v845, %v382
        %v862 = vmul.f32 %v846, %v382
        %v863 = vmul.f32 %v847, %v382
        %v864 = vmul.f32 %v848, %v382
        %v865 = vmul.f32 %v849, %v382
        %v866 = vmul.f32 %v850, %v382
        %v867 = vmul.f32 %v851, %v382
        %v868 = vmul.f32 %v852, %v382
        %v869 = vmul.f32 %v853, %v382
        %v870 = vmul.f32 %v854, %v382
        %v871 = vmul.f32 %v855, %v382
        %v872 = vmul.f32 %v856, %v382
        %v873 = vmul.f32 %v857, %v382
        %v874 = vmul.f32 %v858, %v382
        %v875 = vmul.f32 %v859, %v382
        %v876 = vadd.f32 %v860, 0.0
        %v877 = vadd.f32 %v861, 0.0
        %v878 = vadd.f32 %v862, 0.0
        %v879 = vadd.f32 %v863, 0.0
        %v880 = vadd.f32 %v864, 0.0
        %v881 = vadd.f32 %v865, 0.0
        %v882 = vadd.f32 %v866, 0.0
        %v883 = vadd.f32 %v867, 0.0
        %v884 = vadd.f32 %v868, 0.0
        %v885 = vadd.f32 %v869, 0.0
        %v886 = vadd.f32 %v870, 0.0
        %v887 = vadd.f32 %v871, 0.0
        %v888 = vadd.f32 %v872, 0.0
        %v889 = vadd.f32 %v873, 0.0
        %v890 = vadd.f32 %v874, 0.0
        %v891 = vadd.f32 %v875, 0.0
        %v892 = vld [vmem:[%s843 + $0x1] sm:$0xff]
        %v893 = vld [vmem:[%s843 + $0x9] sm:$0xff]
        %v894 = vld [vmem:[%s843 + $0x19] sm:$0xff]
        %v895 = vld [vmem:[%s843 + $0x21] sm:$0xff]
        %v896 = vld [vmem:[%s843 + $0x31] sm:$0xff]
        %v897 = vld [vmem:[%s843 + $0x39] sm:$0xff]
        %v898 = vld [vmem:[%s843 + $0x49] sm:$0xff]
        %v899 = vld [vmem:[%s843 + $0x51] sm:$0xff]
        %v900 = vld [vmem:[%s843 + $0x61] sm:$0xff]
        %v901 = vld [vmem:[%s843 + $0x69] sm:$0xff]
        %v902 = vld [vmem:[%s843 + $0x79] sm:$0xff]
        %v903 = vld [vmem:[%s843 + $0x81] sm:$0xff]
        %v904 = vld [vmem:[%s843 + $0x91] sm:$0xff]
        %v905 = vld [vmem:[%s843 + $0x99] sm:$0xff]
        %v906 = vld [vmem:[%s843 + $0xa9] sm:$0xff]
        %v907 = vld [vmem:[%s843 + $0xb1] sm:$0xff]
        %v908 = vmul.f32 %v892, %v431
        %v909 = vmul.f32 %v893, %v431
        %v910 = vmul.f32 %v894, %v431
        %v911 = vmul.f32 %v895, %v431
        %v912 = vmul.f32 %v896, %v431
        %v913 = vmul.f32 %v897, %v431
        %v914 = vmul.f32 %v898, %v431
        %v915 = vmul.f32 %v899, %v431
        %v916 = vmul.f32 %v900, %v431
        %v917 = vmul.f32 %v901, %v431
        %v918 = vmul.f32 %v902, %v431
        %v919 = vmul.f32 %v903, %v431
        %v920 = vmul.f32 %v904, %v431
        %v921 = vmul.f32 %v905, %v431
        %v922 = vmul.f32 %v906, %v431
        %v923 = vmul.f32 %v907, %v431
        %v924 = vadd.f32 %v876, %v908
        %v925 = vadd.f32 %v877, %v909
        %v926 = vadd.f32 %v878, %v910
        %v927 = vadd.f32 %v879, %v911
        %v928 = vadd.f32 %v880, %v912
        %v929 = vadd.f32 %v881, %v913
        %v930 = vadd.f32 %v882, %v914
        %v931 = vadd.f32 %v883, %v915
        %v932 = vadd.f32 %v884, %v916
        %v933 = vadd.f32 %v885, %v917
        %v934 = vadd.f32 %v886, %v918
        %v935 = vadd.f32 %v887, %v919
        %v936 = vadd.f32 %v888, %v920
        %v937 = vadd.f32 %v889, %v921
        %v938 = vadd.f32 %v890, %v922
        %v939 = vadd.f32 %v891, %v923
        %v940 = vld [vmem:[%s843 + $0x2] sm:$0xff]
        %v941 = vld [vmem:[%s843 + $0xa] sm:$0xff]
        %v942 = vld [vmem:[%s843 + $0x1a] sm:$0xff]
        %v943 = vld [vmem:[%s843 + $0x22] sm:$0xff]
        %v944 = vld [vmem:[%s843 + $0x32] sm:$0xff]
        %v945 = vld [vmem:[%s843 + $0x3a] sm:$0xff]
        %v946 = vld [vmem:[%s843 + $0x4a] sm:$0xff]
        %v947 = vld [vmem:[%s843 + $0x52] sm:$0xff]
        %v948 = vld [vmem:[%s843 + $0x62] sm:$0xff]
        %v949 = vld [vmem:[%s843 + $0x6a] sm:$0xff]
        %v950 = vld [vmem:[%s843 + $0x7a] sm:$0xff]
        %v951 = vld [vmem:[%s843 + $0x82] sm:$0xff]
        %v952 = vld [vmem:[%s843 + $0x92] sm:$0xff]
        %v953 = vld [vmem:[%s843 + $0x9a] sm:$0xff]
        %v954 = vld [vmem:[%s843 + $0xaa] sm:$0xff]
        %v955 = vld [vmem:[%s843 + $0xb2] sm:$0xff]
        %v956 = vmul.f32 %v940, %v480
        %v957 = vmul.f32 %v941, %v480
        %v958 = vmul.f32 %v942, %v480
        %v959 = vmul.f32 %v943, %v480
        %v960 = vmul.f32 %v944, %v480
        %v961 = vmul.f32 %v945, %v480
        %v962 = vmul.f32 %v946, %v480
        %v963 = vmul.f32 %v947, %v480
        %v964 = vmul.f32 %v948, %v480
        %v965 = vmul.f32 %v949, %v480
        %v966 = vmul.f32 %v950, %v480
        %v967 = vmul.f32 %v951, %v480
        %v968 = vmul.f32 %v952, %v480
        %v969 = vmul.f32 %v953, %v480
        %v970 = vmul.f32 %v954, %v480
        %v971 = vmul.f32 %v955, %v480
        %v972 = vadd.f32 %v924, %v956
        %v973 = vadd.f32 %v925, %v957
        %v974 = vadd.f32 %v926, %v958
        %v975 = vadd.f32 %v927, %v959
        %v976 = vadd.f32 %v928, %v960
        %v977 = vadd.f32 %v929, %v961
        %v978 = vadd.f32 %v930, %v962
        %v979 = vadd.f32 %v931, %v963
        %v980 = vadd.f32 %v932, %v964
        %v981 = vadd.f32 %v933, %v965
        %v982 = vadd.f32 %v934, %v966
        %v983 = vadd.f32 %v935, %v967
        %v984 = vadd.f32 %v936, %v968
        %v985 = vadd.f32 %v937, %v969
        %v986 = vadd.f32 %v938, %v970
        %v987 = vadd.f32 %v939, %v971
        %v988 = vld [vmem:[%s324] sm:$0xff]
        %v989 = vld [vmem:[%s324 + $0x8] sm:$0xff]
        %v990 = vld [vmem:[%s324 + $0x18] sm:$0xff]
        %v991 = vld [vmem:[%s324 + $0x20] sm:$0xff]
        %v992 = vld [vmem:[%s324 + $0x30] sm:$0xff]
        %v993 = vld [vmem:[%s324 + $0x38] sm:$0xff]
        %v994 = vld [vmem:[%s324 + $0x48] sm:$0xff]
        %v995 = vld [vmem:[%s324 + $0x50] sm:$0xff]
        %v996 = vld [vmem:[%s324 + $0x60] sm:$0xff]
        %v997 = vld [vmem:[%s324 + $0x68] sm:$0xff]
        %v998 = vld [vmem:[%s324 + $0x78] sm:$0xff]
        %v999 = vld [vmem:[%s324 + $0x80] sm:$0xff]
        %v1000 = vld [vmem:[%s324 + $0x90] sm:$0xff]
        %v1001 = vld [vmem:[%s324 + $0x98] sm:$0xff]
        %v1002 = vld [vmem:[%s324 + $0xa8] sm:$0xff]
        %v1003 = vld [vmem:[%s324 + $0xb0] sm:$0xff]
        %v1004 = vmul.f32 %v988, %v529
        %v1005 = vmul.f32 %v989, %v529
        %v1006 = vmul.f32 %v990, %v529
        %v1007 = vmul.f32 %v991, %v529
        %v1008 = vmul.f32 %v992, %v529
        %v1009 = vmul.f32 %v993, %v529
        %v1010 = vmul.f32 %v994, %v529
        %v1011 = vmul.f32 %v995, %v529
        %v1012 = vmul.f32 %v996, %v529
        %v1013 = vmul.f32 %v997, %v529
        %v1014 = vmul.f32 %v998, %v529
        %v1015 = vmul.f32 %v999, %v529
        %v1016 = vmul.f32 %v1000, %v529
        %v1017 = vmul.f32 %v1001, %v529
        %v1018 = vmul.f32 %v1002, %v529
        %v1019 = vmul.f32 %v1003, %v529
        %v1020 = vadd.f32 %v972, %v1004
        %v1021 = vadd.f32 %v973, %v1005
        %v1022 = vadd.f32 %v974, %v1006
        %v1023 = vadd.f32 %v975, %v1007
        %v1024 = vadd.f32 %v976, %v1008
        %v1025 = vadd.f32 %v977, %v1009
        %v1026 = vadd.f32 %v978, %v1010
        %v1027 = vadd.f32 %v979, %v1011
        %v1028 = vadd.f32 %v980, %v1012
        %v1029 = vadd.f32 %v981, %v1013
        %v1030 = vadd.f32 %v982, %v1014
        %v1031 = vadd.f32 %v983, %v1015
        %v1032 = vadd.f32 %v984, %v1016
        %v1033 = vadd.f32 %v985, %v1017
        %v1034 = vadd.f32 %v986, %v1018
        %v1035 = vadd.f32 %v987, %v1019
        %v1036 = vld [vmem:[%s324 + $0x1] sm:$0xff]
        %v1037 = vld [vmem:[%s324 + $0x9] sm:$0xff]
        %v1038 = vld [vmem:[%s324 + $0x19] sm:$0xff]
        %v1039 = vld [vmem:[%s324 + $0x21] sm:$0xff]
        %v1040 = vld [vmem:[%s324 + $0x31] sm:$0xff]
        %v1041 = vld [vmem:[%s324 + $0x39] sm:$0xff]
        %v1042 = vld [vmem:[%s324 + $0x49] sm:$0xff]
        %v1043 = vld [vmem:[%s324 + $0x51] sm:$0xff]
        %v1044 = vld [vmem:[%s324 + $0x61] sm:$0xff]
        %v1045 = vld [vmem:[%s324 + $0x69] sm:$0xff]
        %v1046 = vld [vmem:[%s324 + $0x79] sm:$0xff]
        %v1047 = vld [vmem:[%s324 + $0x81] sm:$0xff]
        %v1048 = vld [vmem:[%s324 + $0x91] sm:$0xff]
        %v1049 = vld [vmem:[%s324 + $0x99] sm:$0xff]
        %v1050 = vld [vmem:[%s324 + $0xa9] sm:$0xff]
        %v1051 = vld [vmem:[%s324 + $0xb1] sm:$0xff]
        %v1052 = vmul.f32 %v1036, %v578
        %v1053 = vmul.f32 %v1037, %v578
        %v1054 = vmul.f32 %v1038, %v578
        %v1055 = vmul.f32 %v1039, %v578
        %v1056 = vmul.f32 %v1040, %v578
        %v1057 = vmul.f32 %v1041, %v578
        %v1058 = vmul.f32 %v1042, %v578
        %v1059 = vmul.f32 %v1043, %v578
        %v1060 = vmul.f32 %v1044, %v578
        %v1061 = vmul.f32 %v1045, %v578
        %v1062 = vmul.f32 %v1046, %v578
        %v1063 = vmul.f32 %v1047, %v578
        %v1064 = vmul.f32 %v1048, %v578
        %v1065 = vmul.f32 %v1049, %v578
        %v1066 = vmul.f32 %v1050, %v578
        %v1067 = vmul.f32 %v1051, %v578
        %v1068 = vadd.f32 %v1020, %v1052
        %v1069 = vadd.f32 %v1021, %v1053
        %v1070 = vadd.f32 %v1022, %v1054
        %v1071 = vadd.f32 %v1023, %v1055
        %v1072 = vadd.f32 %v1024, %v1056
        %v1073 = vadd.f32 %v1025, %v1057
        %v1074 = vadd.f32 %v1026, %v1058
        %v1075 = vadd.f32 %v1027, %v1059
        %v1076 = vadd.f32 %v1028, %v1060
        %v1077 = vadd.f32 %v1029, %v1061
        %v1078 = vadd.f32 %v1030, %v1062
        %v1079 = vadd.f32 %v1031, %v1063
        %v1080 = vadd.f32 %v1032, %v1064
        %v1081 = vadd.f32 %v1033, %v1065
        %v1082 = vadd.f32 %v1034, %v1066
        %v1083 = vadd.f32 %v1035, %v1067
        %v1084 = vld [vmem:[%s324 + $0x2] sm:$0xff]
        %v1085 = vld [vmem:[%s324 + $0xa] sm:$0xff]
        %v1086 = vld [vmem:[%s324 + $0x1a] sm:$0xff]
        %v1087 = vld [vmem:[%s324 + $0x22] sm:$0xff]
        %v1088 = vld [vmem:[%s324 + $0x32] sm:$0xff]
        %v1089 = vld [vmem:[%s324 + $0x3a] sm:$0xff]
        %v1090 = vld [vmem:[%s324 + $0x4a] sm:$0xff]
        %v1091 = vld [vmem:[%s324 + $0x52] sm:$0xff]
        %v1092 = vld [vmem:[%s324 + $0x62] sm:$0xff]
        %v1093 = vld [vmem:[%s324 + $0x6a] sm:$0xff]
        %v1094 = vld [vmem:[%s324 + $0x7a] sm:$0xff]
        %v1095 = vld [vmem:[%s324 + $0x82] sm:$0xff]
        %v1096 = vld [vmem:[%s324 + $0x92] sm:$0xff]
        %v1097 = vld [vmem:[%s324 + $0x9a] sm:$0xff]
        %v1098 = vld [vmem:[%s324 + $0xaa] sm:$0xff]
        %v1099 = vld [vmem:[%s324 + $0xb2] sm:$0xff]
        %v1100 = vmul.f32 %v1084, %v627
        %v1101 = vmul.f32 %v1085, %v627
        %v1102 = vmul.f32 %v1086, %v627
        %v1103 = vmul.f32 %v1087, %v627
        %v1104 = vmul.f32 %v1088, %v627
        %v1105 = vmul.f32 %v1089, %v627
        %v1106 = vmul.f32 %v1090, %v627
        %v1107 = vmul.f32 %v1091, %v627
        %v1108 = vmul.f32 %v1092, %v627
        %v1109 = vmul.f32 %v1093, %v627
        %v1110 = vmul.f32 %v1094, %v627
        %v1111 = vmul.f32 %v1095, %v627
        %v1112 = vmul.f32 %v1096, %v627
        %v1113 = vmul.f32 %v1097, %v627
        %v1114 = vmul.f32 %v1098, %v627
        %v1115 = vmul.f32 %v1099, %v627
        %v1116 = vadd.f32 %v1068, %v1100
        %v1117 = vadd.f32 %v1069, %v1101
        %v1118 = vadd.f32 %v1070, %v1102
        %v1119 = vadd.f32 %v1071, %v1103
        %v1120 = vadd.f32 %v1072, %v1104
        %v1121 = vadd.f32 %v1073, %v1105
        %v1122 = vadd.f32 %v1074, %v1106
        %v1123 = vadd.f32 %v1075, %v1107
        %v1124 = vadd.f32 %v1076, %v1108
        %v1125 = vadd.f32 %v1077, %v1109
        %v1126 = vadd.f32 %v1078, %v1110
        %v1127 = vadd.f32 %v1079, %v1111
        %v1128 = vadd.f32 %v1080, %v1112
        %v1129 = vadd.f32 %v1081, %v1113
        %v1130 = vadd.f32 %v1082, %v1114
        %v1131 = vadd.f32 %v1083, %v1115
        %s1132 = scalar_lea.vmem [#allocation2], 240
        %v1133 = vld [vmem:[%s1132] sm:$0xff]
        %v1134 = vld [vmem:[%s1132 + $0x8] sm:$0xff]
        %v1135 = vld [vmem:[%s1132 + $0x18] sm:$0xff]
        %v1136 = vld [vmem:[%s1132 + $0x20] sm:$0xff]
        %v1137 = vld [vmem:[%s1132 + $0x30] sm:$0xff]
        %v1138 = vld [vmem:[%s1132 + $0x38] sm:$0xff]
        %v1139 = vld [vmem:[%s1132 + $0x48] sm:$0xff]
        %v1140 = vld [vmem:[%s1132 + $0x50] sm:$0xff]
        %v1141 = vld [vmem:[%s1132 + $0x60] sm:$0xff]
        %v1142 = vld [vmem:[%s1132 + $0x68] sm:$0xff]
        %v1143 = vld [vmem:[%s1132 + $0x78] sm:$0xff]
        %v1144 = vld [vmem:[%s1132 + $0x80] sm:$0xff]
        %v1145 = vld [vmem:[%s1132 + $0x90] sm:$0xff]
        %v1146 = vld [vmem:[%s1132 + $0x98] sm:$0xff]
        %v1147 = vld [vmem:[%s1132 + $0xa8] sm:$0xff]
        %v1148 = vld [vmem:[%s1132 + $0xb0] sm:$0xff]
        %v1149 = vmul.f32 %v1133, %v677
        %v1150 = vmul.f32 %v1134, %v677
        %v1151 = vmul.f32 %v1135, %v677
        %v1152 = vmul.f32 %v1136, %v677
        %v1153 = vmul.f32 %v1137, %v677
        %v1154 = vmul.f32 %v1138, %v677
        %v1155 = vmul.f32 %v1139, %v677
        %v1156 = vmul.f32 %v1140, %v677
        %v1157 = vmul.f32 %v1141, %v677
        %v1158 = vmul.f32 %v1142, %v677
        %v1159 = vmul.f32 %v1143, %v677
        %v1160 = vmul.f32 %v1144, %v677
        %v1161 = vmul.f32 %v1145, %v677
        %v1162 = vmul.f32 %v1146, %v677
        %v1163 = vmul.f32 %v1147, %v677
        %v1164 = vmul.f32 %v1148, %v677
        %v1165 = vadd.f32 %v1116, %v1149
        %v1166 = vadd.f32 %v1117, %v1150
        %v1167 = vadd.f32 %v1118, %v1151
        %v1168 = vadd.f32 %v1119, %v1152
        %v1169 = vadd.f32 %v1120, %v1153
        %v1170 = vadd.f32 %v1121, %v1154
        %v1171 = vadd.f32 %v1122, %v1155
        %v1172 = vadd.f32 %v1123, %v1156
        %v1173 = vadd.f32 %v1124, %v1157
        %v1174 = vadd.f32 %v1125, %v1158
        %v1175 = vadd.f32 %v1126, %v1159
        %v1176 = vadd.f32 %v1127, %v1160
        %v1177 = vadd.f32 %v1128, %v1161
        %v1178 = vadd.f32 %v1129, %v1162
        %v1179 = vadd.f32 %v1130, %v1163
        %v1180 = vadd.f32 %v1131, %v1164
        %v1181 = vld [vmem:[%s1132 + $0x1] sm:$0xff]
        %v1182 = vld [vmem:[%s1132 + $0x9] sm:$0xff]
        %v1183 = vld [vmem:[%s1132 + $0x19] sm:$0xff]
        %v1184 = vld [vmem:[%s1132 + $0x21] sm:$0xff]
        %v1185 = vld [vmem:[%s1132 + $0x31] sm:$0xff]
        %v1186 = vld [vmem:[%s1132 + $0x39] sm:$0xff]
        %v1187 = vld [vmem:[%s1132 + $0x49] sm:$0xff]
        %v1188 = vld [vmem:[%s1132 + $0x51] sm:$0xff]
        %v1189 = vld [vmem:[%s1132 + $0x61] sm:$0xff]
        %v1190 = vld [vmem:[%s1132 + $0x69] sm:$0xff]
        %v1191 = vld [vmem:[%s1132 + $0x79] sm:$0xff]
        %v1192 = vld [vmem:[%s1132 + $0x81] sm:$0xff]
        %v1193 = vld [vmem:[%s1132 + $0x91] sm:$0xff]
        %v1194 = vld [vmem:[%s1132 + $0x99] sm:$0xff]
        %v1195 = vld [vmem:[%s1132 + $0xa9] sm:$0xff]
        %v1196 = vld [vmem:[%s1132 + $0xb1] sm:$0xff]
        %v1197 = vmul.f32 %v1181, %v726
        %v1198 = vmul.f32 %v1182, %v726
        %v1199 = vmul.f32 %v1183, %v726
        %v1200 = vmul.f32 %v1184, %v726
        %v1201 = vmul.f32 %v1185, %v726
        %v1202 = vmul.f32 %v1186, %v726
        %v1203 = vmul.f32 %v1187, %v726
        %v1204 = vmul.f32 %v1188, %v726
        %v1205 = vmul.f32 %v1189, %v726
        %v1206 = vmul.f32 %v1190, %v726
        %v1207 = vmul.f32 %v1191, %v726
        %v1208 = vmul.f32 %v1192, %v726
        %v1209 = vmul.f32 %v1193, %v726
        %v1210 = vmul.f32 %v1194, %v726
        %v1211 = vmul.f32 %v1195, %v726
        %v1212 = vmul.f32 %v1196, %v726
        %v1213 = vadd.f32 %v1165, %v1197
        %v1214 = vadd.f32 %v1166, %v1198
        %v1215 = vadd.f32 %v1167, %v1199
        %v1216 = vadd.f32 %v1168, %v1200
        %v1217 = vadd.f32 %v1169, %v1201
        %v1218 = vadd.f32 %v1170, %v1202
        %v1219 = vadd.f32 %v1171, %v1203
        %v1220 = vadd.f32 %v1172, %v1204
        %v1221 = vadd.f32 %v1173, %v1205
        %v1222 = vadd.f32 %v1174, %v1206
        %v1223 = vadd.f32 %v1175, %v1207
        %v1224 = vadd.f32 %v1176, %v1208
        %v1225 = vadd.f32 %v1177, %v1209
        %v1226 = vadd.f32 %v1178, %v1210
        %v1227 = vadd.f32 %v1179, %v1211
        %v1228 = vadd.f32 %v1180, %v1212
        %v1229 = vld [vmem:[%s1132 + $0x2] sm:$0xff]
        %v1230 = vld [vmem:[%s1132 + $0xa] sm:$0xff]
        %v1231 = vld [vmem:[%s1132 + $0x1a] sm:$0xff]
        %v1232 = vld [vmem:[%s1132 + $0x22] sm:$0xff]
        %v1233 = vld [vmem:[%s1132 + $0x32] sm:$0xff]
        %v1234 = vld [vmem:[%s1132 + $0x3a] sm:$0xff]
        %v1235 = vld [vmem:[%s1132 + $0x4a] sm:$0xff]
        %v1236 = vld [vmem:[%s1132 + $0x52] sm:$0xff]
        %v1237 = vld [vmem:[%s1132 + $0x62] sm:$0xff]
        %v1238 = vld [vmem:[%s1132 + $0x6a] sm:$0xff]
        %v1239 = vld [vmem:[%s1132 + $0x7a] sm:$0xff]
        %v1240 = vld [vmem:[%s1132 + $0x82] sm:$0xff]
        %v1241 = vld [vmem:[%s1132 + $0x92] sm:$0xff]
        %v1242 = vld [vmem:[%s1132 + $0x9a] sm:$0xff]
        %v1243 = vld [vmem:[%s1132 + $0xaa] sm:$0xff]
        %v1244 = vld [vmem:[%s1132 + $0xb2] sm:$0xff]
        %v1245 = vmul.f32 %v1229, %v775
        %v1246 = vmul.f32 %v1230, %v775
        %v1247 = vmul.f32 %v1231, %v775
        %v1248 = vmul.f32 %v1232, %v775
        %v1249 = vmul.f32 %v1233, %v775
        %v1250 = vmul.f32 %v1234, %v775
        %v1251 = vmul.f32 %v1235, %v775
        %v1252 = vmul.f32 %v1236, %v775
        %v1253 = vmul.f32 %v1237, %v775
        %v1254 = vmul.f32 %v1238, %v775
        %v1255 = vmul.f32 %v1239, %v775
        %v1256 = vmul.f32 %v1240, %v775
        %v1257 = vmul.f32 %v1241, %v775
        %v1258 = vmul.f32 %v1242, %v775
        %v1259 = vmul.f32 %v1243, %v775
        %v1260 = vmul.f32 %v1244, %v775
        %v1261 = vadd.f32 %v1213, %v1245
        %v1262 = vadd.f32 %v1214, %v1246
        %v1263 = vadd.f32 %v1215, %v1247
        %v1264 = vadd.f32 %v1216, %v1248
        %v1265 = vadd.f32 %v1217, %v1249
        %v1266 = vadd.f32 %v1218, %v1250
        %v1267 = vadd.f32 %v1219, %v1251
        %v1268 = vadd.f32 %v1220, %v1252
        %v1269 = vadd.f32 %v1221, %v1253
        %v1270 = vadd.f32 %v1222, %v1254
        %v1271 = vadd.f32 %v1223, %v1255
        %v1272 = vadd.f32 %v1224, %v1256
        %v1273 = vadd.f32 %v1225, %v1257
        %v1274 = vadd.f32 %v1226, %v1258
        %v1275 = vadd.f32 %v1227, %v1259
        %v1276 = vadd.f32 %v1228, %v1260
        %v1277 = vadd.f32 %v1261, %v809
        %v1278 = vadd.f32 %v1262, %v809
        %v1279 = vadd.f32 %v1263, %v809
        %v1280 = vadd.f32 %v1264, %v809
        %v1281 = vadd.f32 %v1265, %v809
        %v1282 = vadd.f32 %v1266, %v809
        %v1283 = vadd.f32 %v1267, %v809
        %v1284 = vadd.f32 %v1268, %v809
        %v1285 = vadd.f32 %v1269, %v809
        %v1286 = vadd.f32 %v1270, %v809
        %v1287 = vadd.f32 %v1271, %v809
        %v1288 = vadd.f32 %v1272, %v809
        %v1289 = vadd.f32 %v1273, %v809
        %v1290 = vadd.f32 %v1274, %v809
        %v1291 = vadd.f32 %v1275, %v809
        %v1292 = vadd.f32 %v1276, %v809
        %s1293 = scalar_lea.vmem %s221, 128 [#allocation8]
        %1294 = vst.msk [vmem:[%s1293] sm:$0xff] %vm224, %v1277
        %1295 = vst.msk [vmem:[%s1293 + $0x8] sm:$0xff] %vm224, %v1278
        %1296 = vst.msk [vmem:[%s1293 + $0x10] sm:$0xff] %vm224, %v1279
        %1297 = vst.msk [vmem:[%s1293 + $0x18] sm:$0xff] %vm224, %v1280
        %1298 = vst.msk [vmem:[%s1293 + $0x20] sm:$0xff] %vm224, %v1281
        %1299 = vst.msk [vmem:[%s1293 + $0x28] sm:$0xff] %vm224, %v1282
        %1300 = vst.msk [vmem:[%s1293 + $0x30] sm:$0xff] %vm224, %v1283
        %1301 = vst.msk [vmem:[%s1293 + $0x38] sm:$0xff] %vm224, %v1284
        %1302 = vst.msk [vmem:[%s1293 + $0x40] sm:$0xff] %vm224, %v1285
        %1303 = vst.msk [vmem:[%s1293 + $0x48] sm:$0xff] %vm224, %v1286
        %1304 = vst.msk [vmem:[%s1293 + $0x50] sm:$0xff] %vm224, %v1287
        %1305 = vst.msk [vmem:[%s1293 + $0x58] sm:$0xff] %vm224, %v1288
        %1306 = vst.msk [vmem:[%s1293 + $0x60] sm:$0xff] %vm224, %v1289
        %1307 = vst.msk [vmem:[%s1293 + $0x68] sm:$0xff] %vm224, %v1290
        %1308 = vst.msk [vmem:[%s1293 + $0x70] sm:$0xff] %vm224, %v1291
        %1309 = vst.msk [vmem:[%s1293 + $0x78] sm:$0xff] %vm224, %v1292
        %s1310 = sand.u32 %s111, 1
        %s1311 = scalar_lea.sflag [#allocation5], %s1310
        %s1312 = sand.u32 %s111, 1
        %s1313 = smul.addr %s1312, 256
        %s1314 = scalar_lea.vmem [#allocation8], %s1313
        // Predicated region
        $region49: #{tpu_custom_call.1} parent=31 // pred_check
          %p1315 = pneg %p121
        $region50: #{tpu_custom_call.1} parent=31 // pred_check_branch
          %1317 = sbr.rel (%p1315) target = $region52
        $region51: #{tpu_custom_call.1} parent=31 // pred_region
          %s1318 = smul.u32 16, %s26
          %1320 = vsyncadd %s1311, 0
          %s1321 = smul.addr %s1318, 2
          %s1322 = smul.addr %s25, 32
          %s1323 = sadd.s32 %s1321, %s1322
          %s1324 = smul.addr %s1323, 8
          %s1325 = scalar_lea.hbm %s3, %s1324
          %s1326 = sshll.u32 %s1314, 4
          %s1327 = int_to_ptr.vmem [resolvable:$true] %s1326
          %s1328 = sshll.u32 %s1325, 4
          %s1329 = int_to_ptr.hbm [resolvable:$true] %s1328
          %1334 = dma.vmem_to_hbm [thread:$0]  %s1327, 4096, %s1329, %s1311, 128, 128, 8
        $region52: #{tpu_custom_call.1} parent=31 // pred_fallthru
          _
      $region32: #{tpu_custom_call.1} parent=5 // pred_fallthru
        _
      %p1335 = scmp.le.s32.totalorder 2, %s16
      // Predicated region
      $region53: #{tpu_custom_call.1} parent=5 // pred_check
        %p1336 = pneg %p1335
      $region54: #{tpu_custom_call.1} parent=5 // pred_check_branch
        %1338 = sbr.rel (%p1336) target = $region56
      $region55: #{tpu_custom_call.1} parent=5 // pred_region
        %s1339 = ssub.s32 %s16, 2
        // Predicated region
        $region57: #{tpu_custom_call.1} parent=55 // pred_check
          %p1340 = pneg %p127
        $region58: #{tpu_custom_call.1} parent=55 // pred_check_branch
          %1342 = sbr.rel (%p1340) target = $region60
        $region59: #{tpu_custom_call.1} parent=55 // pred_region
          %s1343 = sand.u32 %s112, 1
          %s1344 = scalar_lea.sflag [#allocation5], %s1343
          %s1345 = sand.u32 %s112, 1
          %s1346 = smul.addr %s1345, 256
          %s1347 = scalar_lea.vmem [#allocation8], %s1346
          %1349 = dma.done %s1344, 4096
        $region60: #{tpu_custom_call.1} parent=55 // pred_fallthru
          _
      $region56: #{tpu_custom_call.1} parent=5 // pred_fallthru
        _
    $region6: #{tpu_custom_call.1} parent=1 // loop_footer
      %s20 = sadd.s32 1, %s16
    $region7: #{tpu_custom_call.1} parent=1 // loop_footer_branch
      %15 = sbr.rel target = $region3
    $region8: #{tpu_custom_call.1} parent=1 // loop_exit
      _
    %1350 = vsyncpa [#allocation4], 1
    %s1351 = scalar_lea.sflag [#allocation4], 1
    %1352 = vsyncpa %s1351, 1
    %1353 = vsyncpa [#allocation7], 1
    %1354 = vsyncpa [#allocation5], 1
    %s1355 = scalar_lea.sflag [#allocation5], 1
    %1356 = vsyncpa %s1355, 1

</llo_original>
